<compile_context>
chip_gen: v7x
topology: tpu7x:2x2x1
jax: 0.10.0
libtpu: 0.0.40
codegen_flags: <defaults>
</compile_context>

<pallas_src>
import functools
import math

import jax
import jax.numpy as jnp
from jax.experimental import pallas as pl
from jax.experimental.pallas import tpu as pltpu

PAD = 128  # lane-dense padded width for every feature dimension (in/hidden/out <= 128)


def appnp_fused_kernel(x_ref, adj_ref, w_ref, shift_ref, wlast_ref, blast_ref,
                       out_ref, *, num_mlp, K, alpha, out_channels):
    f32 = jnp.float32
    bf16 = jnp.bfloat16

    # --- symmetric gcn_norm of (A + I), (1 - alpha) folded in, computed once in f32 ----
    adj_bf = adj_ref[...].astype(bf16)                     # [NP, NP] 0/1, self-loops in
    ones_bf = jnp.ones_like(adj_bf)
    # Degrees via MXU (exact: 0/1 entries, f32 accumulation), already broadcast to [NP, NP]
    # so no XLU reduce / broadcast / transpose sits on the serial pre-propagation path.
    deg_r = jnp.dot(adj_bf, ones_bf, preferred_element_type=f32)   # row sums, const per row
    deg_c = jnp.dot(ones_bf, adj_bf, preferred_element_type=f32)   # col sums, const per col
    inv_r = jax.lax.rsqrt(jnp.maximum(deg_r, 1.0))
    inv_c = jax.lax.rsqrt(jnp.maximum(deg_c, 1.0))
    a_hat = adj_bf.astype(f32) * inv_r * inv_c * jnp.float32(1.0 - alpha)
    a_hat = a_hat.astype(bf16)                             # bf16 feed for the MXU

    # --- MLP: (Linear -> BatchNorm -> ReLU) x (num_layers - 1) -------------------------
    # BN scale is pre-folded into w_ref columns; linear bias + BN shift are in shift_ref.
    h = x_ref[...]                                         # [NP, 128] f32
    for li in range(num_mlp):                              # static, tiny loop
        z = jnp.dot(h.astype(bf16), w_ref[li],
                    preferred_element_type=f32)            # [NP, 128] f32 acc
        h = jnp.maximum(z + shift_ref[li], 0.0)            # fused BN + ReLU (f32 VPU)
        # TODO(synk): F.dropout is identity in eval mode; no stochastic op emitted.

    # --- final Linear -------------------------------------------------------------------
    z = jnp.dot(h.astype(bf16), wlast_ref[...],
                preferred_element_type=f32) + blast_ref[...]         # [NP, 128]

    # --- APPNP propagation: z_{k+1} = a_hat_scaled @ z_k + alpha * h0 --------------------
    alpha_h0 = jnp.float32(alpha) * z                      # loop-invariant, hoisted

    def prop_step(_, zk):
        return jnp.dot(a_hat, zk.astype(bf16), preferred_element_type=f32) + alpha_h0

    z = jax.lax.fori_loop(0, K, prop_step, z, unroll=True)

    # --- mask pad lanes, row-wise log_softmax, lane-dense store --------------------------
    lane = jax.lax.broadcasted_iota(jnp.int32, z.shape, dimension=1)
    y = jnp.where(lane < out_channels, z, -1e30)
    m = jnp.max(y, axis=-1, keepdims=True)
    e = jnp.exp(y - m)
    lse = jnp.log(jnp.sum(e, axis=-1, keepdims=True))
    out_ref[...] = (y - m) - lse                           # full [NP, 128] unmasked store


@functools.partial(jax.jit, static_argnames=("out_channels", "K", "alpha"))
def appnp_forward(x, adj01, params, *, out_channels, K, alpha):
    """x: [N, in_channels] f32. adj01: [N, N] 0/1 (bool/int) adjacency (self-loops added)."""
    n, fin = x.shape
    num_mlp = params["w"].shape[0]
    np_rows = max(PAD, ((n + PAD - 1) // PAD) * PAD)       # pad node axis to 128 lanes

    x_pad = jnp.zeros((np_rows, PAD), jnp.float32).at[:n, :fin].set(x.astype(jnp.float32))

    # gcn_norm(add_self_loops=True): OR the identity in so callers can't silently diverge.
    adj_sl = jnp.logical_or(adj01.astype(bool), jnp.eye(n, dtype=bool))
    adj_i8 = jnp.zeros((np_rows, np_rows), jnp.int8).at[:n, :n].set(adj_sl.astype(jnp.int8))

    kernel = functools.partial(appnp_fused_kernel, num_mlp=num_mlp, K=K,
                               alpha=alpha, out_channels=out_channels)
    vmem_spec = pl.BlockSpec(memory_space=pltpu.MemorySpace.VMEM)

    out = pl.pallas_call(
        kernel,
        out_shape=jax.ShapeDtypeStruct((np_rows, PAD), jnp.float32),
        in_specs=[vmem_spec] * 6,
        out_specs=vmem_spec,
        compiler_params=pltpu.CompilerParams(vmem_limit_bytes=32 * 1024 * 1024),
    )(x_pad, adj_i8, params["w"], params["shift"], params["w_last"], params["b_last"])

    return out[:n, :out_channels]


def init_appnp_params(key, in_channels, hidden_channels, out_channels, num_layers):
    """Parameters mirroring torch.nn.Linear / BatchNorm1d defaults, padded + BN-folded."""
    dims = [in_channels] + [hidden_channels] * (num_layers - 1) + [out_channels]
    ws, bs = [], []
    for li in range(num_layers):
        fin, fout = dims[li], dims[li + 1]
        key, kw, kb = jax.random.split(key, 3)
        bound = 1.0 / math.sqrt(fin)
        ws.append(jax.random.uniform(kw, (fin, fout), jnp.float32, -bound, bound))
        bs.append(jax.random.uniform(kb, (fout,), jnp.float32, -bound, bound))

    eps = 1e-5
    num_mlp = num_layers - 1
    w_stack = jnp.zeros((num_mlp, PAD, PAD), jnp.float32)
    shift_stack = jnp.zeros((num_mlp, 1, PAD), jnp.float32)
    for li in range(num_mlp):
        fin, fout = dims[li], dims[li + 1]
        # BatchNorm1d eval: gamma=1, beta=0, running_mean=0, running_var=1 (fresh module).
        # TODO(synk): fold real trained gamma/beta/running stats here for a trained checkpoint.
        gamma = jnp.ones((fout,), jnp.float32)
        beta = jnp.zeros((fout,), jnp.float32)
        rmean = jnp.zeros((fout,), jnp.float32)
        rvar = jnp.ones((fout,), jnp.float32)
        s = gamma / jnp.sqrt(rvar + eps)
        w_eff = ws[li] * s[None, :]                 # fold BN scale into the weight
        shift_eff = (bs[li] - rmean) * s + beta     # fold linear bias + BN shift
        w_stack = w_stack.at[li, :fin, :fout].set(w_eff)
        shift_stack = shift_stack.at[li, 0, :fout].set(shift_eff)

    fin, fout = dims[-2], dims[-1]
    w_last = jnp.zeros((PAD, PAD), jnp.float32).at[:fin, :fout].set(ws[-1])
    b_last = jnp.zeros((1, PAD), jnp.float32).at[0, :fout].set(bs[-1])

    return dict(w=w_stack.astype(jnp.bfloat16),
                shift=shift_stack,
                w_last=w_last.astype(jnp.bfloat16),
                b_last=b_last)


if __name__ == "__main__":
    N = 64
    in_channels, hidden_channels, out_channels = 16, 32, 4
    num_layers = 3
    K, alpha = 10, 0.1          # dropout is identity in eval mode

    key = jax.random.PRNGKey(0)
    key, kx, ka, kp = jax.random.split(key, 4)

    x = jax.random.normal(kx, (N, in_channels), jnp.float32)
    # Random undirected graph, dense 0/1 adjacency (self-loops added inside the wrapper).
    a = jax.random.uniform(ka, (N, N)) < 0.15
    a = jnp.logical_or(a, a.T)

    params = init_appnp_params(kp, in_channels, hidden_channels, out_channels, num_layers)

    out = appnp_forward(x, a, params, out_channels=out_channels, K=K, alpha=alpha)
    out = jax.block_until_ready(out)

    # Pure-JAX f32 reference with the same (folded, padded) parameters.
    a_sl = jnp.logical_or(a, jnp.eye(N, dtype=bool))
    adj_f = a_sl.astype(jnp.float32)
    deg_r = jnp.maximum(adj_f.sum(axis=1, keepdims=True), 1.0)
    deg_c = jnp.maximum(adj_f.sum(axis=0, keepdims=True), 1.0)
    a_hat = adj_f / jnp.sqrt(deg_r) / jnp.sqrt(deg_c)
    h = jnp.zeros((N, PAD), jnp.float32).at[:, :in_channels].set(x)
    for li in range(num_layers - 1):
        h = jnp.maximum(h @ params["w"][li].astype(jnp.float32) + params["shift"][li], 0.0)
    z = h @ params["w_last"].astype(jnp.float32) + params["b_last"]
    h0 = z
    for _ in range(K):
        z = (1.0 - alpha) * (a_hat @ z) + alpha * h0
    ref = jax.nn.log_softmax(z[:, :out_channels], axis=-1)

    assert out.shape == (N, out_channels)
    assert bool(jnp.all(jnp.isfinite(out)))
    row_sums = jnp.sum(jnp.exp(out), axis=-1)
    assert bool(jnp.all(jnp.abs(row_sums - 1.0) < 1e-4))
    max_err = float(jnp.max(jnp.abs(out - ref)))
    assert max_err < 0.2, f"mismatch vs reference: {max_err}"

    print("KERNEL_OK")
</pallas_src>

<mosaic_0001>
module attributes {stable_mosaic.version = 11 : i64} {
  func.func @appnp_fused_kernel(%arg0: memref<128x128xf32, #tpu.memory_space<vmem>>, %arg1: memref<128x128xi8, #tpu.memory_space<vmem>>, %arg2: memref<2x128x128xbf16, #tpu.memory_space<vmem>>, %arg3: memref<2x1x128xf32, #tpu.memory_space<vmem>>, %arg4: memref<128x128xbf16, #tpu.memory_space<vmem>>, %arg5: memref<1x128xf32, #tpu.memory_space<vmem>>, %arg6: memref<128x128xf32, #tpu.memory_space<vmem>>) attributes {dimension_semantics = [], scalar_prefetch = 0 : i64, scratch_operands = 0 : i64, tpu.core_type = #tpu.core_type<tc>} {
    %c0 = arith.constant 0 : index
    %c0_0 = arith.constant 0 : index
    %0 = vector.load %arg1[%c0, %c0_0] : memref<128x128xi8, #tpu.memory_space<vmem>>, vector<128x128xi8>
    %1 = arith.sitofp %0 : vector<128x128xi8> to vector<128x128xbf16>
    %cst = arith.constant 1.000000e+00 : bf16
    %2 = vector.broadcast %cst : bf16 to vector<128x128xbf16>
    %cst_1 = arith.constant dense<0.000000e+00> : vector<128x128xf32>
    %3 = tpu.matmul %1, %2, %cst_1 {dimension_numbers = #tpu.dot_dimension_numbers<[1], [0], [0], [1], [0, 0, 1, 1], [], []>} : vector<128x128xbf16>, vector<128x128xbf16>, vector<128x128xf32> -> vector<128x128xf32>
    %cst_2 = arith.constant dense<0.000000e+00> : vector<128x128xf32>
    %4 = tpu.matmul %2, %1, %cst_2 {dimension_numbers = #tpu.dot_dimension_numbers<[1], [0], [0], [1], [0, 0, 1, 1], [], []>} : vector<128x128xbf16>, vector<128x128xbf16>, vector<128x128xf32> -> vector<128x128xf32>
    %cst_3 = arith.constant 1.000000e+00 : f32
    %5 = vector.broadcast %cst_3 : f32 to vector<128x128xf32>
    %6 = arith.maximumf %3, %5 : vector<128x128xf32>
    %7 = math.rsqrt %6 : vector<128x128xf32>
    %cst_4 = arith.constant 1.000000e+00 : f32
    %8 = vector.broadcast %cst_4 : f32 to vector<128x128xf32>
    %9 = arith.maximumf %4, %8 : vector<128x128xf32>
    %10 = math.rsqrt %9 : vector<128x128xf32>
    %11 = arith.extf %1 : vector<128x128xbf16> to vector<128x128xf32>
    %12 = arith.mulf %11, %7 : vector<128x128xf32>
    %13 = arith.mulf %12, %10 : vector<128x128xf32>
    %cst_5 = arith.constant 0.899999976 : f32
    %14 = vector.broadcast %cst_5 : f32 to vector<128x128xf32>
    %15 = arith.mulf %13, %14 : vector<128x128xf32>
    %16 = arith.truncf %15 : vector<128x128xf32> to vector<128x128xbf16>
    %c0_6 = arith.constant 0 : index
    %c0_7 = arith.constant 0 : index
    %17 = vector.load %arg0[%c0_6, %c0_7] : memref<128x128xf32, #tpu.memory_space<vmem>>, vector<128x128xf32>
    %18 = arith.truncf %17 : vector<128x128xf32> to vector<128x128xbf16>
    %c0_8 = arith.constant 0 : index
    %c0_9 = arith.constant 0 : index
    %c0_10 = arith.constant 0 : index
    %19 = vector.load %arg2[%c0_8, %c0_9, %c0_10] : memref<2x128x128xbf16, #tpu.memory_space<vmem>>, vector<1x128x128xbf16>
    %20 = vector.shape_cast %19 : vector<1x128x128xbf16> to vector<128x128xbf16>
    %cst_11 = arith.constant dense<0.000000e+00> : vector<128x128xf32>
    %21 = tpu.matmul %18, %20, %cst_11 {dimension_numbers = #tpu.dot_dimension_numbers<[1], [0], [0], [1], [0, 0, 1, 1], [], []>} : vector<128x128xbf16>, vector<128x128xbf16>, vector<128x128xf32> -> vector<128x128xf32>
    %c0_12 = arith.constant 0 : index
    %c0_13 = arith.constant 0 : index
    %c0_14 = arith.constant 0 : index
    %22 = vector.load %arg3[%c0_12, %c0_13, %c0_14] : memref<2x1x128xf32, #tpu.memory_space<vmem>>, vector<1x1x128xf32>
    %23 = vector.shape_cast %22 : vector<1x1x128xf32> to vector<1x128xf32>
    %24 = vector.broadcast %23 : vector<1x128xf32> to vector<128x128xf32>
    %25 = arith.addf %21, %24 : vector<128x128xf32>
    %cst_15 = arith.constant 0.000000e+00 : f32
    %26 = vector.broadcast %cst_15 : f32 to vector<128x128xf32>
    %27 = arith.maximumf %25, %26 : vector<128x128xf32>
    %28 = arith.truncf %27 : vector<128x128xf32> to vector<128x128xbf16>
    %c1 = arith.constant 1 : index
    %c0_16 = arith.constant 0 : index
    %c0_17 = arith.constant 0 : index
    %29 = vector.load %arg2[%c1, %c0_16, %c0_17] : memref<2x128x128xbf16, #tpu.memory_space<vmem>>, vector<1x128x128xbf16>
    %30 = vector.shape_cast %29 : vector<1x128x128xbf16> to vector<128x128xbf16>
    %cst_18 = arith.constant dense<0.000000e+00> : vector<128x128xf32>
    %31 = tpu.matmul %28, %30, %cst_18 {dimension_numbers = #tpu.dot_dimension_numbers<[1], [0], [0], [1], [0, 0, 1, 1], [], []>} : vector<128x128xbf16>, vector<128x128xbf16>, vector<128x128xf32> -> vector<128x128xf32>
    %c1_19 = arith.constant 1 : index
    %c0_20 = arith.constant 0 : index
    %c0_21 = arith.constant 0 : index
    %32 = vector.load %arg3[%c1_19, %c0_20, %c0_21] : memref<2x1x128xf32, #tpu.memory_space<vmem>>, vector<1x1x128xf32>
    %33 = vector.shape_cast %32 : vector<1x1x128xf32> to vector<1x128xf32>
    %34 = vector.broadcast %33 : vector<1x128xf32> to vector<128x128xf32>
    %35 = arith.addf %31, %34 : vector<128x128xf32>
    %cst_22 = arith.constant 0.000000e+00 : f32
    %36 = vector.broadcast %cst_22 : f32 to vector<128x128xf32>
    %37 = arith.maximumf %35, %36 : vector<128x128xf32>
    %38 = arith.truncf %37 : vector<128x128xf32> to vector<128x128xbf16>
    %c0_23 = arith.constant 0 : index
    %c0_24 = arith.constant 0 : index
    %39 = vector.load %arg4[%c0_23, %c0_24] : memref<128x128xbf16, #tpu.memory_space<vmem>>, vector<128x128xbf16>
    %cst_25 = arith.constant dense<0.000000e+00> : vector<128x128xf32>
    %40 = tpu.matmul %38, %39, %cst_25 {dimension_numbers = #tpu.dot_dimension_numbers<[1], [0], [0], [1], [0, 0, 1, 1], [], []>} : vector<128x128xbf16>, vector<128x128xbf16>, vector<128x128xf32> -> vector<128x128xf32>
    %c0_26 = arith.constant 0 : index
    %c0_27 = arith.constant 0 : index
    %41 = vector.load %arg5[%c0_26, %c0_27] : memref<1x128xf32, #tpu.memory_space<vmem>>, vector<1x128xf32>
    %42 = vector.broadcast %41 : vector<1x128xf32> to vector<128x128xf32>
    %43 = arith.addf %40, %42 : vector<128x128xf32>
    %cst_28 = arith.constant 1.000000e-01 : f32
    %44 = vector.broadcast %cst_28 : f32 to vector<128x128xf32>
    %45 = arith.mulf %44, %43 : vector<128x128xf32>
    %c0_i32 = arith.constant 0 : i32
    %46 = arith.truncf %43 : vector<128x128xf32> to vector<128x128xbf16>
    %cst_29 = arith.constant dense<0.000000e+00> : vector<128x128xf32>
    %47 = tpu.matmul %16, %46, %cst_29 {dimension_numbers = #tpu.dot_dimension_numbers<[1], [0], [0], [1], [0, 0, 1, 1], [], []>} : vector<128x128xbf16>, vector<128x128xbf16>, vector<128x128xf32> -> vector<128x128xf32>
    %48 = arith.addf %47, %45 : vector<128x128xf32>
    %c1_i32 = arith.constant 1 : i32
    %49 = arith.truncf %48 : vector<128x128xf32> to vector<128x128xbf16>
    %cst_30 = arith.constant dense<0.000000e+00> : vector<128x128xf32>
    %50 = tpu.matmul %16, %49, %cst_30 {dimension_numbers = #tpu.dot_dimension_numbers<[1], [0], [0], [1], [0, 0, 1, 1], [], []>} : vector<128x128xbf16>, vector<128x128xbf16>, vector<128x128xf32> -> vector<128x128xf32>
    %51 = arith.addf %50, %45 : vector<128x128xf32>
    %c2_i32 = arith.constant 2 : i32
    %52 = arith.truncf %51 : vector<128x128xf32> to vector<128x128xbf16>
    %cst_31 = arith.constant dense<0.000000e+00> : vector<128x128xf32>
    %53 = tpu.matmul %16, %52, %cst_31 {dimension_numbers = #tpu.dot_dimension_numbers<[1], [0], [0], [1], [0, 0, 1, 1], [], []>} : vector<128x128xbf16>, vector<128x128xbf16>, vector<128x128xf32> -> vector<128x128xf32>
    %54 = arith.addf %53, %45 : vector<128x128xf32>
    %c3_i32 = arith.constant 3 : i32
    %55 = arith.truncf %54 : vector<128x128xf32> to vector<128x128xbf16>
    %cst_32 = arith.constant dense<0.000000e+00> : vector<128x128xf32>
    %56 = tpu.matmul %16, %55, %cst_32 {dimension_numbers = #tpu.dot_dimension_numbers<[1], [0], [0], [1], [0, 0, 1, 1], [], []>} : vector<128x128xbf16>, vector<128x128xbf16>, vector<128x128xf32> -> vector<128x128xf32>
    %57 = arith.addf %56, %45 : vector<128x128xf32>
    %c4_i32 = arith.constant 4 : i32
    %58 = arith.truncf %57 : vector<128x128xf32> to vector<128x128xbf16>
    %cst_33 = arith.constant dense<0.000000e+00> : vector<128x128xf32>
    %59 = tpu.matmul %16, %58, %cst_33 {dimension_numbers = #tpu.dot_dimension_numbers<[1], [0], [0], [1], [0, 0, 1, 1], [], []>} : vector<128x128xbf16>, vector<128x128xbf16>, vector<128x128xf32> -> vector<128x128xf32>
    %60 = arith.addf %59, %45 : vector<128x128xf32>
    %c5_i32 = arith.constant 5 : i32
    %61 = arith.truncf %60 : vector<128x128xf32> to vector<128x128xbf16>
    %cst_34 = arith.constant dense<0.000000e+00> : vector<128x128xf32>
    %62 = tpu.matmul %16, %61, %cst_34 {dimension_numbers = #tpu.dot_dimension_numbers<[1], [0], [0], [1], [0, 0, 1, 1], [], []>} : vector<128x128xbf16>, vector<128x128xbf16>, vector<128x128xf32> -> vector<128x128xf32>
    %63 = arith.addf %62, %45 : vector<128x128xf32>
    %c6_i32 = arith.constant 6 : i32
    %64 = arith.truncf %63 : vector<128x128xf32> to vector<128x128xbf16>
    %cst_35 = arith.constant dense<0.000000e+00> : vector<128x128xf32>
    %65 = tpu.matmul %16, %64, %cst_35 {dimension_numbers = #tpu.dot_dimension_numbers<[1], [0], [0], [1], [0, 0, 1, 1], [], []>} : vector<128x128xbf16>, vector<128x128xbf16>, vector<128x128xf32> -> vector<128x128xf32>
    %66 = arith.addf %65, %45 : vector<128x128xf32>
    %c7_i32 = arith.constant 7 : i32
    %67 = arith.truncf %66 : vector<128x128xf32> to vector<128x128xbf16>
    %cst_36 = arith.constant dense<0.000000e+00> : vector<128x128xf32>
    %68 = tpu.matmul %16, %67, %cst_36 {dimension_numbers = #tpu.dot_dimension_numbers<[1], [0], [0], [1], [0, 0, 1, 1], [], []>} : vector<128x128xbf16>, vector<128x128xbf16>, vector<128x128xf32> -> vector<128x128xf32>
    %69 = arith.addf %68, %45 : vector<128x128xf32>
    %c8_i32 = arith.constant 8 : i32
    %70 = arith.truncf %69 : vector<128x128xf32> to vector<128x128xbf16>
    %cst_37 = arith.constant dense<0.000000e+00> : vector<128x128xf32>
    %71 = tpu.matmul %16, %70, %cst_37 {dimension_numbers = #tpu.dot_dimension_numbers<[1], [0], [0], [1], [0, 0, 1, 1], [], []>} : vector<128x128xbf16>, vector<128x128xbf16>, vector<128x128xf32> -> vector<128x128xf32>
    %72 = arith.addf %71, %45 : vector<128x128xf32>
    %c9_i32 = arith.constant 9 : i32
    %73 = arith.truncf %72 : vector<128x128xf32> to vector<128x128xbf16>
    %cst_38 = arith.constant dense<0.000000e+00> : vector<128x128xf32>
    %74 = tpu.matmul %16, %73, %cst_38 {dimension_numbers = #tpu.dot_dimension_numbers<[1], [0], [0], [1], [0, 0, 1, 1], [], []>} : vector<128x128xbf16>, vector<128x128xbf16>, vector<128x128xf32> -> vector<128x128xf32>
    %75 = arith.addf %74, %45 : vector<128x128xf32>
    %76 = tpu.iota {dimensions = array<i32: 1>} : vector<128x128xi32>
    %c4_i32_39 = arith.constant 4 : i32
    %77 = vector.broadcast %c4_i32_39 : i32 to vector<128x128xi32>
    %78 = arith.cmpi slt, %76, %77 : vector<128x128xi32>
    %cst_40 = arith.constant -1.000000e+30 : f32
    %79 = vector.broadcast %cst_40 : f32 to vector<128x128xf32>
    %80 = arith.select %78, %75, %79 : vector<128x128xi1>, vector<128x128xf32>
    %cst_41 = arith.constant dense<0xFF800000> : vector<128xf32>
    %81 = vector.multi_reduction <maximumf>, %80, %cst_41 [1] : vector<128x128xf32> to vector<128xf32>
    %82 = vector.shape_cast %81 : vector<128xf32> to vector<128x1xf32>
    %83 = vector.broadcast %82 : vector<128x1xf32> to vector<128x128xf32>
    %84 = arith.subf %80, %83 : vector<128x128xf32>
    %85 = math.exp %84 : vector<128x128xf32>
    %cst_42 = arith.constant dense<0.000000e+00> : vector<128xf32>
    %86 = vector.multi_reduction <add>, %85, %cst_42 [1] : vector<128x128xf32> to vector<128xf32>
    %87 = vector.shape_cast %86 : vector<128xf32> to vector<128x1xf32>
    %88 = math.log %87 : vector<128x1xf32>
    %89 = vector.broadcast %82 : vector<128x1xf32> to vector<128x128xf32>
    %90 = arith.subf %80, %89 : vector<128x128xf32>
    %91 = vector.broadcast %88 : vector<128x1xf32> to vector<128x128xf32>
    %92 = arith.subf %90, %91 : vector<128x128xf32>
    %c0_43 = arith.constant 0 : index
    %c0_44 = arith.constant 0 : index
    %93 = vector.load %arg6[%c0_43, %c0_44] : memref<128x128xf32, #tpu.memory_space<vmem>>, vector<128x128xf32>
    tpu.vector_store %arg6[%c0_43, %c0_44], %92 {strides = array<i32>} : memref<128x128xf32, #tpu.memory_space<vmem>>, vector<128x128xf32>,
    return
  }
}

</mosaic_0001>

<llo_original>
// kernel: appnp_forward.1
$region0: #{appnp_forward.1}
  #allocation0 [shape = 'u32[]', space=smem, size = 0x4, offset = 0x4, fixed_abs, tag = 'smem constant byte address 0x4 - core index']
  #allocation1 [shape = 'u32[144,128]{1,0:T(1,128)}', space=vmem, size = 0x12000, scoped, tag = 'internal scratch']
  %s0 = inlined_call_operand.vmem [shape: f32[128,128], index: 0, kind: input, shape index: {}]
  %s1 = inlined_call_operand.vmem [shape: s8[128,128], index: 1, kind: input, shape index: {}]
  %s2 = inlined_call_operand.vmem [shape: bf16[2,128,128], index: 2, kind: input, shape index: {}]
  %s3 = inlined_call_operand.vmem [shape: f32[2,1,128], index: 3, kind: input, shape index: {}]
  %s4 = inlined_call_operand.vmem [shape: bf16[128,128], index: 4, kind: input, shape index: {}]
  %s5 = inlined_call_operand.vmem [shape: f32[1,128], index: 5, kind: input, shape index: {}]
  %s6 = inlined_call_operand.vmem [shape: f32[128,128], index: 6, kind: output, shape index: {}]
  %s7 = sld [smem:[#allocation0]]
  $region34: #{appnp_forward.1} parent=0
    _
  %s9 = ssub.s32 1, %s7
  %s10 = scalar_select 0, %s9, %s7
  // Predicated region
  $region2: #{appnp_forward.1} parent=0 // pred_check
    _
  $region3: #{appnp_forward.1} parent=0 // pred_check_branch
    %12 = sbr.rel (0) target = $region5
  $region4: #{appnp_forward.1} parent=0 // pred_region
    _
  $region5: #{appnp_forward.1} parent=0 // pred_fallthru
    _
  // Predicated region
  $region6: #{appnp_forward.1} parent=0 // pred_check
    _
  $region7: #{appnp_forward.1} parent=0 // pred_check_branch
    %14 = sbr.rel (0) target = $region9
  $region8: #{appnp_forward.1} parent=0 // pred_region
    _
  $region9: #{appnp_forward.1} parent=0 // pred_fallthru
    _
  // Predicated region
  $region10: #{appnp_forward.1} parent=0 // pred_check
    _
  $region11: #{appnp_forward.1} parent=0 // pred_check_branch
    %16 = sbr.rel (0) target = $region13
  $region12: #{appnp_forward.1} parent=0 // pred_region
    _
  $region13: #{appnp_forward.1} parent=0 // pred_fallthru
    _
  // Predicated region
  $region14: #{appnp_forward.1} parent=0 // pred_check
    _
  $region15: #{appnp_forward.1} parent=0 // pred_check_branch
    %18 = sbr.rel (0) target = $region17
  $region16: #{appnp_forward.1} parent=0 // pred_region
    _
  $region17: #{appnp_forward.1} parent=0 // pred_fallthru
    _
  // Predicated region
  $region18: #{appnp_forward.1} parent=0 // pred_check
    _
  $region19: #{appnp_forward.1} parent=0 // pred_check_branch
    %20 = sbr.rel (0) target = $region21
  $region20: #{appnp_forward.1} parent=0 // pred_region
    _
  $region21: #{appnp_forward.1} parent=0 // pred_fallthru
    _
  // Predicated region
  $region22: #{appnp_forward.1} parent=0 // pred_check
    _
  $region23: #{appnp_forward.1} parent=0 // pred_check_branch
    %22 = sbr.rel (0) target = $region25
  $region24: #{appnp_forward.1} parent=0 // pred_region
    _
  $region25: #{appnp_forward.1} parent=0 // pred_fallthru
    _
  %v25 = vld [vmem:[%s1] sm:$0xff]
  %v26 = vld [vmem:[%s1 + $0x8] sm:$0xff]
  %v27 = vld [vmem:[%s1 + $0x10] sm:$0xff]
  %v28 = vld [vmem:[%s1 + $0x18] sm:$0xff]
  %v29 = vunpack.c.l.s8.bf16 %v25
  %v30 = vunpack.c.h.s8.bf16 %v25
  %v31 = vunpack.c.l.s8.bf16 %v26
  %v32 = vunpack.c.h.s8.bf16 %v26
  %v33 = vunpack.c.l.s8.bf16 %v27
  %v34 = vunpack.c.h.s8.bf16 %v27
  %v35 = vunpack.c.l.s8.bf16 %v28
  %v36 = vunpack.c.h.s8.bf16 %v28
  %37 = vmatprep.subr.bf16.mxu0 0
  %38 = vmatpush1.bf16.msra.mxu0 1065369472
  %39 = vmatprep.subr.bf16.mxu0 0
  %40 = vmatpush1.bf16.msra.mxu0 1065369472
  %41 = vmatprep.subr.bf16.mxu0 0
  %42 = vmatpush1.bf16.msra.mxu0 1065369472
  %43 = vmatprep.subr.bf16.mxu0 0
  %44 = vmatpush1.bf16.msra.mxu0 1065369472
  %45 = vmatprep.subr.bf16.mxu0 0
  %46 = vmatpush1.bf16.msra.mxu0 1065369472
  %47 = vmatprep.subr.bf16.mxu0 0
  %48 = vmatpush1.bf16.msra.mxu0 1065369472
  %49 = vmatprep.subr.bf16.mxu0 0
  %50 = vmatpush1.bf16.msra.mxu0 1065369472
  %51 = vmatprep.subr.bf16.mxu0 0
  %52 = vmatpush1.bf16.msra.mxu0 1065369472
  %53 = vmatprep.subr.bf16.mxu0 0
  %54 = vmatpush1.bf16.msra.mxu0 0
  %55 = vmatprep.subr.bf16.mxu0 0
  %56 = vmatpush1.bf16.msra.mxu0 0
  %57 = vmatprep.subr.bf16.mxu0 0
  %58 = vmatpush1.bf16.msra.mxu0 0
  %59 = vmatprep.subr.bf16.mxu0 0
  %60 = vmatpush1.bf16.msra.mxu0 0
  %61 = vmatprep.subr.bf16.mxu0 0
  %62 = vmatpush1.bf16.msra.mxu0 0
  %63 = vmatprep.subr.bf16.mxu0 0
  %64 = vmatpush1.bf16.msra.mxu0 0
  %65 = vmatprep.subr.bf16.mxu0 0
  %66 = vmatpush1.bf16.msra.mxu0 0
  %67 = vmatprep.subr.bf16.mxu0 0
  %68 = vmatpush1.bf16.msra.mxu0 0
  %69 = vmatprep.mubr.bf16.mxu0 0
  %70 = vmatmul.mubr.bf16.gmra.mrb[0].mxu0 %v29
  %v71 = vpop.f32.mrb[0].mxu0
  %v72 = vadd.f32 0.0, %v71
  %v73 = vpop.f32.mrb[0].mxu0
  %v74 = vpop.f32.mrb[0].mxu0
  %v75 = vadd.f32 0.0, %v74
  %v76 = vpop.f32.mrb[0].mxu0
  %77 = vmatprep.mubr.bf16.mxu0 0
  %78 = vmatmul.mubr.bf16.gmra.mrb[0].mxu0 %v30
  %v79 = vpop.f32.mrb[0].mxu0
  %v80 = vadd.f32 0.0, %v79
  %v81 = vpop.f32.mrb[0].mxu0
  %v82 = vpop.f32.mrb[0].mxu0
  %v83 = vadd.f32 0.0, %v82
  %v84 = vpop.f32.mrb[0].mxu0
  %85 = vmatprep.mubr.bf16.mxu0 0
  %86 = vmatmul.mubr.bf16.gmra.mrb[0].mxu0 %v31
  %v87 = vpop.f32.mrb[0].mxu0
  %v88 = vadd.f32 0.0, %v87
  %v89 = vpop.f32.mrb[0].mxu0
  %v90 = vpop.f32.mrb[0].mxu0
  %v91 = vadd.f32 0.0, %v90
  %v92 = vpop.f32.mrb[0].mxu0
  %93 = vmatprep.mubr.bf16.mxu0 0
  %94 = vmatmul.mubr.bf16.gmra.mrb[0].mxu0 %v32
  %v95 = vpop.f32.mrb[0].mxu0
  %v96 = vadd.f32 0.0, %v95
  %v97 = vpop.f32.mrb[0].mxu0
  %v98 = vpop.f32.mrb[0].mxu0
  %v99 = vadd.f32 0.0, %v98
  %v100 = vpop.f32.mrb[0].mxu0
  %101 = vmatprep.mubr.bf16.mxu0 0
  %102 = vmatmul.mubr.bf16.gmra.mrb[0].mxu0 %v33
  %v103 = vpop.f32.mrb[0].mxu0
  %v104 = vadd.f32 0.0, %v103
  %v105 = vpop.f32.mrb[0].mxu0
  %v106 = vpop.f32.mrb[0].mxu0
  %v107 = vadd.f32 0.0, %v106
  %v108 = vpop.f32.mrb[0].mxu0
  %109 = vmatprep.mubr.bf16.mxu0 0
  %110 = vmatmul.mubr.bf16.gmra.mrb[0].mxu0 %v34
  %v111 = vpop.f32.mrb[0].mxu0
  %v112 = vadd.f32 0.0, %v111
  %v113 = vpop.f32.mrb[0].mxu0
  %v114 = vpop.f32.mrb[0].mxu0
  %v115 = vadd.f32 0.0, %v114
  %v116 = vpop.f32.mrb[0].mxu0
  %117 = vmatprep.mubr.bf16.mxu0 0
  %118 = vmatmul.mubr.bf16.gmra.mrb[0].mxu0 %v35
  %v119 = vpop.f32.mrb[0].mxu0
  %v120 = vadd.f32 0.0, %v119
  %v121 = vpop.f32.mrb[0].mxu0
  %v122 = vpop.f32.mrb[0].mxu0
  %v123 = vadd.f32 0.0, %v122
  %v124 = vpop.f32.mrb[0].mxu0
  %125 = vmatprep.mubr.bf16.mxu0 0
  %126 = vmatmul.mubr.bf16.gmra.mrb[0].mxu0 %v36
  %v127 = vpop.f32.mrb[0].mxu0
  %v128 = vadd.f32 0.0, %v127
  %v129 = vpop.f32.mrb[0].mxu0
  %v130 = vpop.f32.mrb[0].mxu0
  %v131 = vadd.f32 0.0, %v130
  %v132 = vpop.f32.mrb[0].mxu0
  %133 = vdwg.mxu0
  %134 = vmatprep.subr.bf16.mxu0 0
  %135 = vmatpush1.bf16.msra.mxu0 %v29
  %136 = vmatprep.subr.bf16.mxu0 0
  %137 = vmatpush1.bf16.msra.mxu0 %v30
  %138 = vmatprep.subr.bf16.mxu0 0
  %139 = vmatpush1.bf16.msra.mxu0 %v31
  %140 = vmatprep.subr.bf16.mxu0 0
  %141 = vmatpush1.bf16.msra.mxu0 %v32
  %142 = vmatprep.subr.bf16.mxu0 0
  %143 = vmatpush1.bf16.msra.mxu0 %v33
  %144 = vmatprep.subr.bf16.mxu0 0
  %145 = vmatpush1.bf16.msra.mxu0 %v34
  %146 = vmatprep.subr.bf16.mxu0 0
  %147 = vmatpush1.bf16.msra.mxu0 %v35
  %148 = vmatprep.subr.bf16.mxu0 0
  %149 = vmatpush1.bf16.msra.mxu0 %v36
  %150 = vmatprep.subr.bf16.mxu0 0
  %151 = vmatpush1.bf16.msra.mxu0 0
  %152 = vmatprep.subr.bf16.mxu0 0
  %153 = vmatpush1.bf16.msra.mxu0 0
  %154 = vmatprep.subr.bf16.mxu0 0
  %155 = vmatpush1.bf16.msra.mxu0 0
  %156 = vmatprep.subr.bf16.mxu0 0
  %157 = vmatpush1.bf16.msra.mxu0 0
  %158 = vmatprep.subr.bf16.mxu0 0
  %159 = vmatpush1.bf16.msra.mxu0 0
  %160 = vmatprep.subr.bf16.mxu0 0
  %161 = vmatpush1.bf16.msra.mxu0 0
  %162 = vmatprep.subr.bf16.mxu0 0
  %163 = vmatpush1.bf16.msra.mxu0 0
  %164 = vmatprep.subr.bf16.mxu0 0
  %165 = vmatpush1.bf16.msra.mxu0 0
  %166 = vmatprep.mubr.bf16.mxu0 0
  %167 = vmatmul.mubr.bf16.gmra.mrb[0].mxu0 1065369472
  %v168 = vpop.f32.mrb[0].mxu0
  %v169 = vadd.f32 0.0, %v168
  %v170 = vpop.f32.mrb[0].mxu0
  %v171 = vpop.f32.mrb[0].mxu0
  %v172 = vadd.f32 0.0, %v171
  %v173 = vpop.f32.mrb[0].mxu0
  %174 = vmatprep.mubr.bf16.mxu0 0
  %175 = vmatmul.mubr.bf16.gmra.mrb[0].mxu0 1065369472
  %v176 = vpop.f32.mrb[0].mxu0
  %v177 = vadd.f32 0.0, %v176
  %v178 = vpop.f32.mrb[0].mxu0
  %v179 = vpop.f32.mrb[0].mxu0
  %v180 = vadd.f32 0.0, %v179
  %v181 = vpop.f32.mrb[0].mxu0
  %182 = vmatprep.mubr.bf16.mxu0 0
  %183 = vmatmul.mubr.bf16.gmra.mrb[0].mxu0 1065369472
  %v184 = vpop.f32.mrb[0].mxu0
  %v185 = vadd.f32 0.0, %v184
  %v186 = vpop.f32.mrb[0].mxu0
  %v187 = vpop.f32.mrb[0].mxu0
  %v188 = vadd.f32 0.0, %v187
  %v189 = vpop.f32.mrb[0].mxu0
  %190 = vmatprep.mubr.bf16.mxu0 0
  %191 = vmatmul.mubr.bf16.gmra.mrb[0].mxu0 1065369472
  %v192 = vpop.f32.mrb[0].mxu0
  %v193 = vadd.f32 0.0, %v192
  %v194 = vpop.f32.mrb[0].mxu0
  %v195 = vpop.f32.mrb[0].mxu0
  %v196 = vadd.f32 0.0, %v195
  %v197 = vpop.f32.mrb[0].mxu0
  %198 = vmatprep.mubr.bf16.mxu0 0
  %199 = vmatmul.mubr.bf16.gmra.mrb[0].mxu0 1065369472
  %v200 = vpop.f32.mrb[0].mxu0
  %v201 = vadd.f32 0.0, %v200
  %v202 = vpop.f32.mrb[0].mxu0
  %v203 = vpop.f32.mrb[0].mxu0
  %v204 = vadd.f32 0.0, %v203
  %v205 = vpop.f32.mrb[0].mxu0
  %206 = vmatprep.mubr.bf16.mxu0 0
  %207 = vmatmul.mubr.bf16.gmra.mrb[0].mxu0 1065369472
  %v208 = vpop.f32.mrb[0].mxu0
  %v209 = vadd.f32 0.0, %v208
  %v210 = vpop.f32.mrb[0].mxu0
  %v211 = vpop.f32.mrb[0].mxu0
  %v212 = vadd.f32 0.0, %v211
  %v213 = vpop.f32.mrb[0].mxu0
  %214 = vmatprep.mubr.bf16.mxu0 0
  %215 = vmatmul.mubr.bf16.gmra.mrb[0].mxu0 1065369472
  %v216 = vpop.f32.mrb[0].mxu0
  %v217 = vadd.f32 0.0, %v216
  %v218 = vpop.f32.mrb[0].mxu0
  %v219 = vpop.f32.mrb[0].mxu0
  %v220 = vadd.f32 0.0, %v219
  %v221 = vpop.f32.mrb[0].mxu0
  %222 = vmatprep.mubr.bf16.mxu0 0
  %223 = vmatmul.mubr.bf16.gmra.mrb[0].mxu0 1065369472
  %v224 = vpop.f32.mrb[0].mxu0
  %v225 = vadd.f32 0.0, %v224
  %v226 = vpop.f32.mrb[0].mxu0
  %v227 = vpop.f32.mrb[0].mxu0
  %v228 = vadd.f32 0.0, %v227
  %v229 = vpop.f32.mrb[0].mxu0
  %230 = vdwg.mxu0
  %v231 = vmax.f32 %v72, 1.0
  %v232 = vmax.f32 %v75, 1.0
  %v233 = vmax.f32 %v80, 1.0
  %v234 = vmax.f32 %v83, 1.0
  %v235 = vmax.f32 %v88, 1.0
  %v236 = vmax.f32 %v91, 1.0
  %v237 = vmax.f32 %v96, 1.0
  %v238 = vmax.f32 %v99, 1.0
  %v239 = vmax.f32 %v104, 1.0
  %v240 = vmax.f32 %v107, 1.0
  %v241 = vmax.f32 %v112, 1.0
  %v242 = vmax.f32 %v115, 1.0
  %v243 = vmax.f32 %v120, 1.0
  %v244 = vmax.f32 %v123, 1.0
  %v245 = vmax.f32 %v128, 1.0
  %v246 = vmax.f32 %v131, 1.0
  %v247 = vrsqrt.pop %v231
  %v248 = vrsqrt.pop %v232
  %v249 = vrsqrt.pop %v233
  %v250 = vrsqrt.pop %v234
  %v251 = vrsqrt.pop %v235
  %v252 = vrsqrt.pop %v236
  %v253 = vrsqrt.pop %v237
  %v254 = vrsqrt.pop %v238
  %v255 = vrsqrt.pop %v239
  %v256 = vrsqrt.pop %v240
  %v257 = vrsqrt.pop %v241
  %v258 = vrsqrt.pop %v242
  %v259 = vrsqrt.pop %v243
  %v260 = vrsqrt.pop %v244
  %v261 = vrsqrt.pop %v245
  %v262 = vrsqrt.pop %v246
  %v263 = vmax.f32 %v169, 1.0
  %v264 = vmax.f32 %v172, 1.0
  %v265 = vmax.f32 %v177, 1.0
  %v266 = vmax.f32 %v180, 1.0
  %v267 = vmax.f32 %v185, 1.0
  %v268 = vmax.f32 %v188, 1.0
  %v269 = vmax.f32 %v193, 1.0
  %v270 = vmax.f32 %v196, 1.0
  %v271 = vmax.f32 %v201, 1.0
  %v272 = vmax.f32 %v204, 1.0
  %v273 = vmax.f32 %v209, 1.0
  %v274 = vmax.f32 %v212, 1.0
  %v275 = vmax.f32 %v217, 1.0
  %v276 = vmax.f32 %v220, 1.0
  %v277 = vmax.f32 %v225, 1.0
  %v278 = vmax.f32 %v228, 1.0
  %v279 = vrsqrt.pop %v263
  %v280 = vrsqrt.pop %v264
  %v281 = vrsqrt.pop %v265
  %v282 = vrsqrt.pop %v266
  %v283 = vrsqrt.pop %v267
  %v284 = vrsqrt.pop %v268
  %v285 = vrsqrt.pop %v269
  %v286 = vrsqrt.pop %v270
  %v287 = vrsqrt.pop %v271
  %v288 = vrsqrt.pop %v272
  %v289 = vrsqrt.pop %v273
  %v290 = vrsqrt.pop %v274
  %v291 = vrsqrt.pop %v275
  %v292 = vrsqrt.pop %v276
  %v293 = vrsqrt.pop %v277
  %v294 = vrsqrt.pop %v278
  %v295 = vunpack.c.l.bf16 %v29
  %v296 = vunpack.c.h.bf16 %v29
  %v297 = vunpack.c.l.bf16 %v30
  %v298 = vunpack.c.h.bf16 %v30
  %v299 = vunpack.c.l.bf16 %v31
  %v300 = vunpack.c.h.bf16 %v31
  %v301 = vunpack.c.l.bf16 %v32
  %v302 = vunpack.c.h.bf16 %v32
  %v303 = vunpack.c.l.bf16 %v33
  %v304 = vunpack.c.h.bf16 %v33
  %v305 = vunpack.c.l.bf16 %v34
  %v306 = vunpack.c.h.bf16 %v34
  %v307 = vunpack.c.l.bf16 %v35
  %v308 = vunpack.c.h.bf16 %v35
  %v309 = vunpack.c.l.bf16 %v36
  %v310 = vunpack.c.h.bf16 %v36
  %v311 = vmul.f32 %v295, %v247
  %v312 = vmul.f32 %v296, %v248
  %v313 = vmul.f32 %v297, %v249
  %v314 = vmul.f32 %v298, %v250
  %v315 = vmul.f32 %v299, %v251
  %v316 = vmul.f32 %v300, %v252
  %v317 = vmul.f32 %v301, %v253
  %v318 = vmul.f32 %v302, %v254
  %v319 = vmul.f32 %v303, %v255
  %v320 = vmul.f32 %v304, %v256
  %v321 = vmul.f32 %v305, %v257
  %v322 = vmul.f32 %v306, %v258
  %v323 = vmul.f32 %v307, %v259
  %v324 = vmul.f32 %v308, %v260
  %v325 = vmul.f32 %v309, %v261
  %v326 = vmul.f32 %v310, %v262
  %v327 = vmul.f32 %v311, %v279
  %v328 = vmul.f32 %v312, %v280
  %v329 = vmul.f32 %v313, %v281
  %v330 = vmul.f32 %v314, %v282
  %v331 = vmul.f32 %v315, %v283
  %v332 = vmul.f32 %v316, %v284
  %v333 = vmul.f32 %v317, %v285
  %v334 = vmul.f32 %v318, %v286
  %v335 = vmul.f32 %v319, %v287
  %v336 = vmul.f32 %v320, %v288
  %v337 = vmul.f32 %v321, %v289
  %v338 = vmul.f32 %v322, %v290
  %v339 = vmul.f32 %v323, %v291
  %v340 = vmul.f32 %v324, %v292
  %v341 = vmul.f32 %v325, %v293
  %v342 = vmul.f32 %v326, %v294
  %v343 = vmul.f32 %v327, 0.9
  %v344 = vmul.f32 %v328, 0.9
  %v345 = vmul.f32 %v329, 0.9
  %v346 = vmul.f32 %v330, 0.9
  %v347 = vmul.f32 %v331, 0.9
  %v348 = vmul.f32 %v332, 0.9
  %v349 = vmul.f32 %v333, 0.9
  %v350 = vmul.f32 %v334, 0.9
  %v351 = vmul.f32 %v335, 0.9
  %v352 = vmul.f32 %v336, 0.9
  %v353 = vmul.f32 %v337, 0.9
  %v354 = vmul.f32 %v338, 0.9
  %v355 = vmul.f32 %v339, 0.9
  %v356 = vmul.f32 %v340, 0.9
  %v357 = vmul.f32 %v341, 0.9
  %v358 = vmul.f32 %v342, 0.9
  %v359 = vpack.c.bf16 %v344, %v343
  %v360 = vpack.c.bf16 %v346, %v345
  %v361 = vpack.c.bf16 %v348, %v347
  %v362 = vpack.c.bf16 %v350, %v349
  %v363 = vpack.c.bf16 %v352, %v351
  %v364 = vpack.c.bf16 %v354, %v353
  %v365 = vpack.c.bf16 %v356, %v355
  %v366 = vpack.c.bf16 %v358, %v357
  %v367 = vld [vmem:[%s0] sm:$0xff]
  %v368 = vld [vmem:[%s0 + $0x8] sm:$0xff]
  %v369 = vld [vmem:[%s0 + $0x10] sm:$0xff]
  %v370 = vld [vmem:[%s0 + $0x18] sm:$0xff]
  %v371 = vld [vmem:[%s0 + $0x20] sm:$0xff]
  %v372 = vld [vmem:[%s0 + $0x28] sm:$0xff]
  %v373 = vld [vmem:[%s0 + $0x30] sm:$0xff]
  %v374 = vld [vmem:[%s0 + $0x38] sm:$0xff]
  %v375 = vld [vmem:[%s0 + $0x40] sm:$0xff]
  %v376 = vld [vmem:[%s0 + $0x48] sm:$0xff]
  %v377 = vld [vmem:[%s0 + $0x50] sm:$0xff]
  %v378 = vld [vmem:[%s0 + $0x58] sm:$0xff]
  %v379 = vld [vmem:[%s0 + $0x60] sm:$0xff]
  %v380 = vld [vmem:[%s0 + $0x68] sm:$0xff]
  %v381 = vld [vmem:[%s0 + $0x70] sm:$0xff]
  %v382 = vld [vmem:[%s0 + $0x78] sm:$0xff]
  %v383 = vpack.c.bf16 %v368, %v367
  %v384 = vpack.c.bf16 %v370, %v369
  %v385 = vpack.c.bf16 %v372, %v371
  %v386 = vpack.c.bf16 %v374, %v373
  %v387 = vpack.c.bf16 %v376, %v375
  %v388 = vpack.c.bf16 %v378, %v377
  %v389 = vpack.c.bf16 %v380, %v379
  %v390 = vpack.c.bf16 %v382, %v381
  %v391 = vld [vmem:[%s2] sm:$0xf]
  %v392 = vld [vmem:[%s2 + $0x4] sm:$0xf]
  %v393 = vld [vmem:[%s2 + $0x8] sm:$0xf]
  %v394 = vld [vmem:[%s2 + $0xc] sm:$0xf]
  %v395 = vld [vmem:[%s2 + $0x10] sm:$0xf]
  %v396 = vld [vmem:[%s2 + $0x14] sm:$0xf]
  %v397 = vld [vmem:[%s2 + $0x18] sm:$0xf]
  %v398 = vld [vmem:[%s2 + $0x1c] sm:$0xf]
  %v399 = vld [vmem:[%s2 + $0x20] sm:$0xf]
  %v400 = vld [vmem:[%s2 + $0x24] sm:$0xf]
  %v401 = vld [vmem:[%s2 + $0x28] sm:$0xf]
  %v402 = vld [vmem:[%s2 + $0x2c] sm:$0xf]
  %v403 = vld [vmem:[%s2 + $0x30] sm:$0xf]
  %v404 = vld [vmem:[%s2 + $0x34] sm:$0xf]
  %v405 = vld [vmem:[%s2 + $0x38] sm:$0xf]
  %v406 = vld [vmem:[%s2 + $0x3c] sm:$0xf]
  %v407 = vld [vmem:[%s3] sm:$0x1]
  %v409 = vlaneseq
  %v410 = vshrl.u32 %v409, 7
  %v411 = vsub.s32 0, %v410
  %v412 = vrot.slane %v407, %v411
  %v430 = vunpack.c.l.b16 %v391
  %v431 = vunpack.c.l.b16 %v392
  %v432 = vunpack.c.l.b16 %v393
  %v433 = vunpack.c.l.b16 %v394
  %v434 = vunpack.c.l.b16 %v395
  %v435 = vunpack.c.l.b16 %v396
  %v436 = vunpack.c.l.b16 %v397
  %v437 = vunpack.c.l.b16 %v398
  %v438 = vunpack.c.l.b16 %v399
  %v439 = vunpack.c.l.b16 %v400
  %v440 = vunpack.c.l.b16 %v401
  %v441 = vunpack.c.l.b16 %v402
  %v442 = vunpack.c.l.b16 %v403
  %v443 = vunpack.c.l.b16 %v404
  %v444 = vunpack.c.l.b16 %v405
  %v445 = vunpack.c.l.b16 %v406
  %v446 = vpack.c.b16 %v431, %v430
  %v447 = vpack.c.b16 %v433, %v432
  %v448 = vpack.c.b16 %v435, %v434
  %v449 = vpack.c.b16 %v437, %v436
  %v450 = vpack.c.b16 %v439, %v438
  %v451 = vpack.c.b16 %v441, %v440
  %v452 = vpack.c.b16 %v443, %v442
  %v453 = vpack.c.b16 %v445, %v444
  %462 = vmatprep.subr.bf16.mxu0 0
  %463 = vmatpush1.bf16.msra.mxu0 %v446
  %464 = vmatprep.subr.bf16.mxu0 0
  %465 = vmatpush1.bf16.msra.mxu0 %v447
  %466 = vmatprep.subr.bf16.mxu0 0
  %467 = vmatpush1.bf16.msra.mxu0 %v448
  %468 = vmatprep.subr.bf16.mxu0 0
  %469 = vmatpush1.bf16.msra.mxu0 %v449
  %470 = vmatprep.subr.bf16.mxu0 0
  %471 = vmatpush1.bf16.msra.mxu0 %v450
  %472 = vmatprep.subr.bf16.mxu0 0
  %473 = vmatpush1.bf16.msra.mxu0 %v451
  %474 = vmatprep.subr.bf16.mxu0 0
  %475 = vmatpush1.bf16.msra.mxu0 %v452
  %476 = vmatprep.subr.bf16.mxu0 0
  %477 = vmatpush1.bf16.msra.mxu0 %v453
  %478 = vmatprep.subr.bf16.mxu0 0
  %479 = vmatpush1.bf16.msra.mxu0 0
  %480 = vmatprep.subr.bf16.mxu0 0
  %481 = vmatpush1.bf16.msra.mxu0 0
  %482 = vmatprep.subr.bf16.mxu0 0
  %483 = vmatpush1.bf16.msra.mxu0 0
  %484 = vmatprep.subr.bf16.mxu0 0
  %485 = vmatpush1.bf16.msra.mxu0 0
  %486 = vmatprep.subr.bf16.mxu0 0
  %487 = vmatpush1.bf16.msra.mxu0 0
  %488 = vmatprep.subr.bf16.mxu0 0
  %489 = vmatpush1.bf16.msra.mxu0 0
  %490 = vmatprep.subr.bf16.mxu0 0
  %491 = vmatpush1.bf16.msra.mxu0 0
  %492 = vmatprep.subr.bf16.mxu0 0
  %493 = vmatpush1.bf16.msra.mxu0 0
  %494 = vmatprep.mubr.bf16.mxu0 0
  %495 = vmatmul.mubr.bf16.gmra.mrb[0].mxu0 %v383
  %v496 = vpop.f32.mrb[0].mxu0
  %v497 = vadd.f32 %v412, %v496
  %v498 = vpop.f32.mrb[0].mxu0
  %v499 = vpop.f32.mrb[0].mxu0
  %v500 = vadd.f32 %v412, %v499
  %v501 = vpop.f32.mrb[0].mxu0
  %502 = vmatprep.mubr.bf16.mxu0 0
  %503 = vmatmul.mubr.bf16.gmra.mrb[0].mxu0 %v384
  %v504 = vpop.f32.mrb[0].mxu0
  %v505 = vadd.f32 %v412, %v504
  %v506 = vpop.f32.mrb[0].mxu0
  %v507 = vpop.f32.mrb[0].mxu0
  %v508 = vadd.f32 %v412, %v507
  %v509 = vpop.f32.mrb[0].mxu0
  %510 = vmatprep.mubr.bf16.mxu0 0
  %511 = vmatmul.mubr.bf16.gmra.mrb[0].mxu0 %v385
  %v512 = vpop.f32.mrb[0].mxu0
  %v513 = vadd.f32 %v412, %v512
  %v514 = vpop.f32.mrb[0].mxu0
  %v515 = vpop.f32.mrb[0].mxu0
  %v516 = vadd.f32 %v412, %v515
  %v517 = vpop.f32.mrb[0].mxu0
  %518 = vmatprep.mubr.bf16.mxu0 0
  %519 = vmatmul.mubr.bf16.gmra.mrb[0].mxu0 %v386
  %v520 = vpop.f32.mrb[0].mxu0
  %v521 = vadd.f32 %v412, %v520
  %v522 = vpop.f32.mrb[0].mxu0
  %v523 = vpop.f32.mrb[0].mxu0
  %v524 = vadd.f32 %v412, %v523
  %v525 = vpop.f32.mrb[0].mxu0
  %526 = vmatprep.mubr.bf16.mxu0 0
  %527 = vmatmul.mubr.bf16.gmra.mrb[0].mxu0 %v387
  %v528 = vpop.f32.mrb[0].mxu0
  %v529 = vadd.f32 %v412, %v528
  %v530 = vpop.f32.mrb[0].mxu0
  %v531 = vpop.f32.mrb[0].mxu0
  %v532 = vadd.f32 %v412, %v531
  %v533 = vpop.f32.mrb[0].mxu0
  %534 = vmatprep.mubr.bf16.mxu0 0
  %535 = vmatmul.mubr.bf16.gmra.mrb[0].mxu0 %v388
  %v536 = vpop.f32.mrb[0].mxu0
  %v537 = vadd.f32 %v412, %v536
  %v538 = vpop.f32.mrb[0].mxu0
  %v539 = vpop.f32.mrb[0].mxu0
  %v540 = vadd.f32 %v412, %v539
  %v541 = vpop.f32.mrb[0].mxu0
  %542 = vmatprep.mubr.bf16.mxu0 0
  %543 = vmatmul.mubr.bf16.gmra.mrb[0].mxu0 %v389
  %v544 = vpop.f32.mrb[0].mxu0
  %v545 = vadd.f32 %v412, %v544
  %v546 = vpop.f32.mrb[0].mxu0
  %v547 = vpop.f32.mrb[0].mxu0
  %v548 = vadd.f32 %v412, %v547
  %v549 = vpop.f32.mrb[0].mxu0
  %550 = vmatprep.mubr.bf16.mxu0 0
  %551 = vmatmul.mubr.bf16.gmra.mrb[0].mxu0 %v390
  %v552 = vpop.f32.mrb[0].mxu0
  %v553 = vadd.f32 %v412, %v552
  %v554 = vpop.f32.mrb[0].mxu0
  %v555 = vpop.f32.mrb[0].mxu0
  %v556 = vadd.f32 %v412, %v555
  %v557 = vpop.f32.mrb[0].mxu0
  %558 = vdwg.mxu0
  %v559 = vmax.f32 %v497, 0.0
  %v560 = vmax.f32 %v500, 0.0
  %v561 = vmax.f32 %v505, 0.0
  %v562 = vmax.f32 %v508, 0.0
  %v563 = vmax.f32 %v513, 0.0
  %v564 = vmax.f32 %v516, 0.0
  %v565 = vmax.f32 %v521, 0.0
  %v566 = vmax.f32 %v524, 0.0
  %v567 = vmax.f32 %v529, 0.0
  %v568 = vmax.f32 %v532, 0.0
  %v569 = vmax.f32 %v537, 0.0
  %v570 = vmax.f32 %v540, 0.0
  %v571 = vmax.f32 %v545, 0.0
  %v572 = vmax.f32 %v548, 0.0
  %v573 = vmax.f32 %v553, 0.0
  %v574 = vmax.f32 %v556, 0.0
  %v575 = vpack.c.bf16 %v560, %v559
  %v576 = vpack.c.bf16 %v562, %v561
  %v577 = vpack.c.bf16 %v564, %v563
  %v578 = vpack.c.bf16 %v566, %v565
  %v579 = vpack.c.bf16 %v568, %v567
  %v580 = vpack.c.bf16 %v570, %v569
  %v581 = vpack.c.bf16 %v572, %v571
  %v582 = vpack.c.bf16 %v574, %v573
  %s583 = scalar_lea.vmem %s2, 64
  %v584 = vld [vmem:[%s583] sm:$0xf]
  %v585 = vld [vmem:[%s583 + $0x4] sm:$0xf]
  %v586 = vld [vmem:[%s583 + $0x8] sm:$0xf]
  %v587 = vld [vmem:[%s583 + $0xc] sm:$0xf]
  %v588 = vld [vmem:[%s583 + $0x10] sm:$0xf]
  %v589 = vld [vmem:[%s583 + $0x14] sm:$0xf]
  %v590 = vld [vmem:[%s583 + $0x18] sm:$0xf]
  %v591 = vld [vmem:[%s583 + $0x1c] sm:$0xf]
  %v592 = vld [vmem:[%s583 + $0x20] sm:$0xf]
  %v593 = vld [vmem:[%s583 + $0x24] sm:$0xf]
  %v594 = vld [vmem:[%s583 + $0x28] sm:$0xf]
  %v595 = vld [vmem:[%s583 + $0x2c] sm:$0xf]
  %v596 = vld [vmem:[%s583 + $0x30] sm:$0xf]
  %v597 = vld [vmem:[%s583 + $0x34] sm:$0xf]
  %v598 = vld [vmem:[%s583 + $0x38] sm:$0xf]
  %v599 = vld [vmem:[%s583 + $0x3c] sm:$0xf]
  %s600 = scalar_lea.vmem %s3, 1
  %v601 = vld [vmem:[%s600] sm:$0x1]
  %v603 = vlaneseq
  %v604 = vshrl.u32 %v603, 7
  %v605 = vsub.s32 0, %v604
  %v606 = vrot.slane %v601, %v605
  %v624 = vunpack.c.l.b16 %v584
  %v625 = vunpack.c.l.b16 %v585
  %v626 = vunpack.c.l.b16 %v586
  %v627 = vunpack.c.l.b16 %v587
  %v628 = vunpack.c.l.b16 %v588
  %v629 = vunpack.c.l.b16 %v589
  %v630 = vunpack.c.l.b16 %v590
  %v631 = vunpack.c.l.b16 %v591
  %v632 = vunpack.c.l.b16 %v592
  %v633 = vunpack.c.l.b16 %v593
  %v634 = vunpack.c.l.b16 %v594
  %v635 = vunpack.c.l.b16 %v595
  %v636 = vunpack.c.l.b16 %v596
  %v637 = vunpack.c.l.b16 %v597
  %v638 = vunpack.c.l.b16 %v598
  %v639 = vunpack.c.l.b16 %v599
  %v640 = vpack.c.b16 %v625, %v624
  %v641 = vpack.c.b16 %v627, %v626
  %v642 = vpack.c.b16 %v629, %v628
  %v643 = vpack.c.b16 %v631, %v630
  %v644 = vpack.c.b16 %v633, %v632
  %v645 = vpack.c.b16 %v635, %v634
  %v646 = vpack.c.b16 %v637, %v636
  %v647 = vpack.c.b16 %v639, %v638
  %656 = vmatprep.subr.bf16.mxu0 0
  %657 = vmatpush1.bf16.msra.mxu0 %v640
  %658 = vmatprep.subr.bf16.mxu0 0
  %659 = vmatpush1.bf16.msra.mxu0 %v641
  %660 = vmatprep.subr.bf16.mxu0 0
  %661 = vmatpush1.bf16.msra.mxu0 %v642
  %662 = vmatprep.subr.bf16.mxu0 0
  %663 = vmatpush1.bf16.msra.mxu0 %v643
  %664 = vmatprep.subr.bf16.mxu0 0
  %665 = vmatpush1.bf16.msra.mxu0 %v644
  %666 = vmatprep.subr.bf16.mxu0 0
  %667 = vmatpush1.bf16.msra.mxu0 %v645
  %668 = vmatprep.subr.bf16.mxu0 0
  %669 = vmatpush1.bf16.msra.mxu0 %v646
  %670 = vmatprep.subr.bf16.mxu0 0
  %671 = vmatpush1.bf16.msra.mxu0 %v647
  %672 = vmatprep.subr.bf16.mxu0 0
  %673 = vmatpush1.bf16.msra.mxu0 0
  %674 = vmatprep.subr.bf16.mxu0 0
  %675 = vmatpush1.bf16.msra.mxu0 0
  %676 = vmatprep.subr.bf16.mxu0 0
  %677 = vmatpush1.bf16.msra.mxu0 0
  %678 = vmatprep.subr.bf16.mxu0 0
  %679 = vmatpush1.bf16.msra.mxu0 0
  %680 = vmatprep.subr.bf16.mxu0 0
  %681 = vmatpush1.bf16.msra.mxu0 0
  %682 = vmatprep.subr.bf16.mxu0 0
  %683 = vmatpush1.bf16.msra.mxu0 0
  %684 = vmatprep.subr.bf16.mxu0 0
  %685 = vmatpush1.bf16.msra.mxu0 0
  %686 = vmatprep.subr.bf16.mxu0 0
  %687 = vmatpush1.bf16.msra.mxu0 0
  %688 = vmatprep.mubr.bf16.mxu0 0
  %689 = vmatmul.mubr.bf16.gmra.mrb[0].mxu0 %v575
  %v690 = vpop.f32.mrb[0].mxu0
  %v691 = vadd.f32 %v606, %v690
  %v692 = vpop.f32.mrb[0].mxu0
  %v693 = vpop.f32.mrb[0].mxu0
  %v694 = vadd.f32 %v606, %v693
  %v695 = vpop.f32.mrb[0].mxu0
  %696 = vmatprep.mubr.bf16.mxu0 0
  %697 = vmatmul.mubr.bf16.gmra.mrb[0].mxu0 %v576
  %v698 = vpop.f32.mrb[0].mxu0
  %v699 = vadd.f32 %v606, %v698
  %v700 = vpop.f32.mrb[0].mxu0
  %v701 = vpop.f32.mrb[0].mxu0
  %v702 = vadd.f32 %v606, %v701
  %v703 = vpop.f32.mrb[0].mxu0
  %704 = vmatprep.mubr.bf16.mxu0 0
  %705 = vmatmul.mubr.bf16.gmra.mrb[0].mxu0 %v577
  %v706 = vpop.f32.mrb[0].mxu0
  %v707 = vadd.f32 %v606, %v706
  %v708 = vpop.f32.mrb[0].mxu0
  %v709 = vpop.f32.mrb[0].mxu0
  %v710 = vadd.f32 %v606, %v709
  %v711 = vpop.f32.mrb[0].mxu0
  %712 = vmatprep.mubr.bf16.mxu0 0
  %713 = vmatmul.mubr.bf16.gmra.mrb[0].mxu0 %v578
  %v714 = vpop.f32.mrb[0].mxu0
  %v715 = vadd.f32 %v606, %v714
  %v716 = vpop.f32.mrb[0].mxu0
  %v717 = vpop.f32.mrb[0].mxu0
  %v718 = vadd.f32 %v606, %v717
  %v719 = vpop.f32.mrb[0].mxu0
  %720 = vmatprep.mubr.bf16.mxu0 0
  %721 = vmatmul.mubr.bf16.gmra.mrb[0].mxu0 %v579
  %v722 = vpop.f32.mrb[0].mxu0
  %v723 = vadd.f32 %v606, %v722
  %v724 = vpop.f32.mrb[0].mxu0
  %v725 = vpop.f32.mrb[0].mxu0
  %v726 = vadd.f32 %v606, %v725
  %v727 = vpop.f32.mrb[0].mxu0
  %728 = vmatprep.mubr.bf16.mxu0 0
  %729 = vmatmul.mubr.bf16.gmra.mrb[0].mxu0 %v580
  %v730 = vpop.f32.mrb[0].mxu0
  %v731 = vadd.f32 %v606, %v730
  %v732 = vpop.f32.mrb[0].mxu0
  %v733 = vpop.f32.mrb[0].mxu0
  %v734 = vadd.f32 %v606, %v733
  %v735 = vpop.f32.mrb[0].mxu0
  %736 = vmatprep.mubr.bf16.mxu0 0
  %737 = vmatmul.mubr.bf16.gmra.mrb[0].mxu0 %v581
  %v738 = vpop.f32.mrb[0].mxu0
  %v739 = vadd.f32 %v606, %v738
  %v740 = vpop.f32.mrb[0].mxu0
  %v741 = vpop.f32.mrb[0].mxu0
  %v742 = vadd.f32 %v606, %v741
  %v743 = vpop.f32.mrb[0].mxu0
  %744 = vmatprep.mubr.bf16.mxu0 0
  %745 = vmatmul.mubr.bf16.gmra.mrb[0].mxu0 %v582
  %v746 = vpop.f32.mrb[0].mxu0
  %v747 = vadd.f32 %v606, %v746
  %v748 = vpop.f32.mrb[0].mxu0
  %v749 = vpop.f32.mrb[0].mxu0
  %v750 = vadd.f32 %v606, %v749
  %v751 = vpop.f32.mrb[0].mxu0
  %752 = vdwg.mxu0
  %v753 = vmax.f32 %v691, 0.0
  %v754 = vmax.f32 %v694, 0.0
  %v755 = vmax.f32 %v699, 0.0
  %v756 = vmax.f32 %v702, 0.0
  %v757 = vmax.f32 %v707, 0.0
  %v758 = vmax.f32 %v710, 0.0
  %v759 = vmax.f32 %v715, 0.0
  %v760 = vmax.f32 %v718, 0.0
  %v761 = vmax.f32 %v723, 0.0
  %v762 = vmax.f32 %v726, 0.0
  %v763 = vmax.f32 %v731, 0.0
  %v764 = vmax.f32 %v734, 0.0
  %v765 = vmax.f32 %v739, 0.0
  %v766 = vmax.f32 %v742, 0.0
  %v767 = vmax.f32 %v747, 0.0
  %v768 = vmax.f32 %v750, 0.0
  %v769 = vpack.c.bf16 %v754, %v753
  %v770 = vpack.c.bf16 %v756, %v755
  %v771 = vpack.c.bf16 %v758, %v757
  %v772 = vpack.c.bf16 %v760, %v759
  %v773 = vpack.c.bf16 %v762, %v761
  %v774 = vpack.c.bf16 %v764, %v763
  %v775 = vpack.c.bf16 %v766, %v765
  %v776 = vpack.c.bf16 %v768, %v767
  %v777 = vld [vmem:[%s4] sm:$0xf]
  %v778 = vld [vmem:[%s4 + $0x4] sm:$0xf]
  %v779 = vld [vmem:[%s4 + $0x8] sm:$0xf]
  %v780 = vld [vmem:[%s4 + $0xc] sm:$0xf]
  %v781 = vld [vmem:[%s4 + $0x10] sm:$0xf]
  %v782 = vld [vmem:[%s4 + $0x14] sm:$0xf]
  %v783 = vld [vmem:[%s4 + $0x18] sm:$0xf]
  %v784 = vld [vmem:[%s4 + $0x1c] sm:$0xf]
  %v785 = vld [vmem:[%s4 + $0x20] sm:$0xf]
  %v786 = vld [vmem:[%s4 + $0x24] sm:$0xf]
  %v787 = vld [vmem:[%s4 + $0x28] sm:$0xf]
  %v788 = vld [vmem:[%s4 + $0x2c] sm:$0xf]
  %v789 = vld [vmem:[%s4 + $0x30] sm:$0xf]
  %v790 = vld [vmem:[%s4 + $0x34] sm:$0xf]
  %v791 = vld [vmem:[%s4 + $0x38] sm:$0xf]
  %v792 = vld [vmem:[%s4 + $0x3c] sm:$0xf]
  %v793 = vld [vmem:[%s5] sm:$0x1]
  %v795 = vlaneseq
  %v796 = vshrl.u32 %v795, 7
  %v797 = vsub.s32 0, %v796
  %v798 = vrot.slane %v793, %v797
  %v816 = vunpack.c.l.b16 %v777
  %v817 = vunpack.c.l.b16 %v778
  %v818 = vunpack.c.l.b16 %v779
  %v819 = vunpack.c.l.b16 %v780
  %v820 = vunpack.c.l.b16 %v781
  %v821 = vunpack.c.l.b16 %v782
  %v822 = vunpack.c.l.b16 %v783
  %v823 = vunpack.c.l.b16 %v784
  %v824 = vunpack.c.l.b16 %v785
  %v825 = vunpack.c.l.b16 %v786
  %v826 = vunpack.c.l.b16 %v787
  %v827 = vunpack.c.l.b16 %v788
  %v828 = vunpack.c.l.b16 %v789
  %v829 = vunpack.c.l.b16 %v790
  %v830 = vunpack.c.l.b16 %v791
  %v831 = vunpack.c.l.b16 %v792
  %v832 = vpack.c.b16 %v817, %v816
  %v833 = vpack.c.b16 %v819, %v818
  %v834 = vpack.c.b16 %v821, %v820
  %v835 = vpack.c.b16 %v823, %v822
  %v836 = vpack.c.b16 %v825, %v824
  %v837 = vpack.c.b16 %v827, %v826
  %v838 = vpack.c.b16 %v829, %v828
  %v839 = vpack.c.b16 %v831, %v830
  %848 = vmatprep.subr.bf16.mxu0 0
  %849 = vmatpush1.bf16.msra.mxu0 %v832
  %850 = vmatprep.subr.bf16.mxu0 0
  %851 = vmatpush1.bf16.msra.mxu0 %v833
  %852 = vmatprep.subr.bf16.mxu0 0
  %853 = vmatpush1.bf16.msra.mxu0 %v834
  %854 = vmatprep.subr.bf16.mxu0 0
  %855 = vmatpush1.bf16.msra.mxu0 %v835
  %856 = vmatprep.subr.bf16.mxu0 0
  %857 = vmatpush1.bf16.msra.mxu0 %v836
  %858 = vmatprep.subr.bf16.mxu0 0
  %859 = vmatpush1.bf16.msra.mxu0 %v837
  %860 = vmatprep.subr.bf16.mxu0 0
  %861 = vmatpush1.bf16.msra.mxu0 %v838
  %862 = vmatprep.subr.bf16.mxu0 0
  %863 = vmatpush1.bf16.msra.mxu0 %v839
  %864 = vmatprep.subr.bf16.mxu0 0
  %865 = vmatpush1.bf16.msra.mxu0 0
  %866 = vmatprep.subr.bf16.mxu0 0
  %867 = vmatpush1.bf16.msra.mxu0 0
  %868 = vmatprep.subr.bf16.mxu0 0
  %869 = vmatpush1.bf16.msra.mxu0 0
  %870 = vmatprep.subr.bf16.mxu0 0
  %871 = vmatpush1.bf16.msra.mxu0 0
  %872 = vmatprep.subr.bf16.mxu0 0
  %873 = vmatpush1.bf16.msra.mxu0 0
  %874 = vmatprep.subr.bf16.mxu0 0
  %875 = vmatpush1.bf16.msra.mxu0 0
  %876 = vmatprep.subr.bf16.mxu0 0
  %877 = vmatpush1.bf16.msra.mxu0 0
  %878 = vmatprep.subr.bf16.mxu0 0
  %879 = vmatpush1.bf16.msra.mxu0 0
  %880 = vmatprep.mubr.bf16.mxu0 0
  %881 = vmatmul.mubr.bf16.gmra.mrb[0].mxu0 %v769
  %v882 = vpop.f32.mrb[0].mxu0
  %v883 = vadd.f32 %v798, %v882
  %v884 = vpop.f32.mrb[0].mxu0
  %v885 = vpop.f32.mrb[0].mxu0
  %v886 = vadd.f32 %v798, %v885
  %v887 = vpop.f32.mrb[0].mxu0
  %888 = vmatprep.mubr.bf16.mxu0 0
  %889 = vmatmul.mubr.bf16.gmra.mrb[0].mxu0 %v770
  %v890 = vpop.f32.mrb[0].mxu0
  %v891 = vadd.f32 %v798, %v890
  %v892 = vpop.f32.mrb[0].mxu0
  %v893 = vpop.f32.mrb[0].mxu0
  %v894 = vadd.f32 %v798, %v893
  %v895 = vpop.f32.mrb[0].mxu0
  %896 = vmatprep.mubr.bf16.mxu0 0
  %897 = vmatmul.mubr.bf16.gmra.mrb[0].mxu0 %v771
  %v898 = vpop.f32.mrb[0].mxu0
  %v899 = vadd.f32 %v798, %v898
  %v900 = vpop.f32.mrb[0].mxu0
  %v901 = vpop.f32.mrb[0].mxu0
  %v902 = vadd.f32 %v798, %v901
  %v903 = vpop.f32.mrb[0].mxu0
  %904 = vmatprep.mubr.bf16.mxu0 0
  %905 = vmatmul.mubr.bf16.gmra.mrb[0].mxu0 %v772
  %v906 = vpop.f32.mrb[0].mxu0
  %v907 = vadd.f32 %v798, %v906
  %v908 = vpop.f32.mrb[0].mxu0
  %v909 = vpop.f32.mrb[0].mxu0
  %v910 = vadd.f32 %v798, %v909
  %v911 = vpop.f32.mrb[0].mxu0
  %912 = vmatprep.mubr.bf16.mxu0 0
  %913 = vmatmul.mubr.bf16.gmra.mrb[0].mxu0 %v773
  %v914 = vpop.f32.mrb[0].mxu0
  %v915 = vadd.f32 %v798, %v914
  %v916 = vpop.f32.mrb[0].mxu0
  %v917 = vpop.f32.mrb[0].mxu0
  %v918 = vadd.f32 %v798, %v917
  %v919 = vpop.f32.mrb[0].mxu0
  %920 = vmatprep.mubr.bf16.mxu0 0
  %921 = vmatmul.mubr.bf16.gmra.mrb[0].mxu0 %v774
  %v922 = vpop.f32.mrb[0].mxu0
  %v923 = vadd.f32 %v798, %v922
  %v924 = vpop.f32.mrb[0].mxu0
  %v925 = vpop.f32.mrb[0].mxu0
  %v926 = vadd.f32 %v798, %v925
  %v927 = vpop.f32.mrb[0].mxu0
  %928 = vmatprep.mubr.bf16.mxu0 0
  %929 = vmatmul.mubr.bf16.gmra.mrb[0].mxu0 %v775
  %v930 = vpop.f32.mrb[0].mxu0
  %v931 = vadd.f32 %v798, %v930
  %v932 = vpop.f32.mrb[0].mxu0
  %v933 = vpop.f32.mrb[0].mxu0
  %v934 = vadd.f32 %v798, %v933
  %v935 = vpop.f32.mrb[0].mxu0
  %936 = vmatprep.mubr.bf16.mxu0 0
  %937 = vmatmul.mubr.bf16.gmra.mrb[0].mxu0 %v776
  %v938 = vpop.f32.mrb[0].mxu0
  %v939 = vadd.f32 %v798, %v938
  %v940 = vpop.f32.mrb[0].mxu0
  %v941 = vpop.f32.mrb[0].mxu0
  %v942 = vadd.f32 %v798, %v941
  %v943 = vpop.f32.mrb[0].mxu0
  %944 = vdwg.mxu0
  %v945 = vmul.f32 %v883, 0.1
  %v946 = vmul.f32 %v886, 0.1
  %v947 = vmul.f32 %v891, 0.1
  %v948 = vmul.f32 %v894, 0.1
  %v949 = vmul.f32 %v899, 0.1
  %v950 = vmul.f32 %v902, 0.1
  %v951 = vmul.f32 %v907, 0.1
  %v952 = vmul.f32 %v910, 0.1
  %v953 = vmul.f32 %v915, 0.1
  %v954 = vmul.f32 %v918, 0.1
  %v955 = vmul.f32 %v923, 0.1
  %v956 = vmul.f32 %v926, 0.1
  %v957 = vmul.f32 %v931, 0.1
  %v958 = vmul.f32 %v934, 0.1
  %v959 = vmul.f32 %v939, 0.1
  %v960 = vmul.f32 %v942, 0.1
  %v961 = vpack.c.bf16 %v886, %v883
  %v962 = vpack.c.bf16 %v894, %v891
  %v963 = vpack.c.bf16 %v902, %v899
  %v964 = vpack.c.bf16 %v910, %v907
  %v965 = vpack.c.bf16 %v918, %v915
  %v966 = vpack.c.bf16 %v926, %v923
  %v967 = vpack.c.bf16 %v934, %v931
  %v968 = vpack.c.bf16 %v942, %v939
  %969 = vmatprep.subr.bf16.mxu0 0
  %970 = vmatpush1.bf16.msra.mxu0 %v961
  %971 = vmatprep.subr.bf16.mxu0 0
  %972 = vmatpush1.bf16.msra.mxu0 %v962
  %973 = vmatprep.subr.bf16.mxu0 0
  %974 = vmatpush1.bf16.msra.mxu0 %v963
  %975 = vmatprep.subr.bf16.mxu0 0
  %976 = vmatpush1.bf16.msra.mxu0 %v964
  %977 = vmatprep.subr.bf16.mxu0 0
  %978 = vmatpush1.bf16.msra.mxu0 %v965
  %979 = vmatprep.subr.bf16.mxu0 0
  %980 = vmatpush1.bf16.msra.mxu0 %v966
  %981 = vmatprep.subr.bf16.mxu0 0
  %982 = vmatpush1.bf16.msra.mxu0 %v967
  %983 = vmatprep.subr.bf16.mxu0 0
  %984 = vmatpush1.bf16.msra.mxu0 %v968
  %985 = vmatprep.subr.bf16.mxu0 0
  %986 = vmatpush1.bf16.msra.mxu0 0
  %987 = vmatprep.subr.bf16.mxu0 0
  %988 = vmatpush1.bf16.msra.mxu0 0
  %989 = vmatprep.subr.bf16.mxu0 0
  %990 = vmatpush1.bf16.msra.mxu0 0
  %991 = vmatprep.subr.bf16.mxu0 0
  %992 = vmatpush1.bf16.msra.mxu0 0
  %993 = vmatprep.subr.bf16.mxu0 0
  %994 = vmatpush1.bf16.msra.mxu0 0
  %995 = vmatprep.subr.bf16.mxu0 0
  %996 = vmatpush1.bf16.msra.mxu0 0
  %997 = vmatprep.subr.bf16.mxu0 0
  %998 = vmatpush1.bf16.msra.mxu0 0
  %999 = vmatprep.subr.bf16.mxu0 0
  %1000 = vmatpush1.bf16.msra.mxu0 0
  %1001 = vmatprep.mubr.bf16.mxu0 0
  %1002 = vmatmul.mubr.bf16.gmra.mrb[0].mxu0 %v359
  %v1003 = vpop.f32.mrb[0].mxu0
  %v1004 = vadd.f32 %v945, %v1003
  %v1005 = vpop.f32.mrb[0].mxu0
  %v1006 = vpop.f32.mrb[0].mxu0
  %v1007 = vadd.f32 %v946, %v1006
  %v1008 = vpop.f32.mrb[0].mxu0
  %1009 = vmatprep.mubr.bf16.mxu0 0
  %1010 = vmatmul.mubr.bf16.gmra.mrb[0].mxu0 %v360
  %v1011 = vpop.f32.mrb[0].mxu0
  %v1012 = vadd.f32 %v947, %v1011
  %v1013 = vpop.f32.mrb[0].mxu0
  %v1014 = vpop.f32.mrb[0].mxu0
  %v1015 = vadd.f32 %v948, %v1014
  %v1016 = vpop.f32.mrb[0].mxu0
  %1017 = vmatprep.mubr.bf16.mxu0 0
  %1018 = vmatmul.mubr.bf16.gmra.mrb[0].mxu0 %v361
  %v1019 = vpop.f32.mrb[0].mxu0
  %v1020 = vadd.f32 %v949, %v1019
  %v1021 = vpop.f32.mrb[0].mxu0
  %v1022 = vpop.f32.mrb[0].mxu0
  %v1023 = vadd.f32 %v950, %v1022
  %v1024 = vpop.f32.mrb[0].mxu0
  %1025 = vmatprep.mubr.bf16.mxu0 0
  %1026 = vmatmul.mubr.bf16.gmra.mrb[0].mxu0 %v362
  %v1027 = vpop.f32.mrb[0].mxu0
  %v1028 = vadd.f32 %v951, %v1027
  %v1029 = vpop.f32.mrb[0].mxu0
  %v1030 = vpop.f32.mrb[0].mxu0
  %v1031 = vadd.f32 %v952, %v1030
  %v1032 = vpop.f32.mrb[0].mxu0
  %1033 = vmatprep.mubr.bf16.mxu0 0
  %1034 = vmatmul.mubr.bf16.gmra.mrb[0].mxu0 %v363
  %v1035 = vpop.f32.mrb[0].mxu0
  %v1036 = vadd.f32 %v953, %v1035
  %v1037 = vpop.f32.mrb[0].mxu0
  %v1038 = vpop.f32.mrb[0].mxu0
  %v1039 = vadd.f32 %v954, %v1038
  %v1040 = vpop.f32.mrb[0].mxu0
  %1041 = vmatprep.mubr.bf16.mxu0 0
  %1042 = vmatmul.mubr.bf16.gmra.mrb[0].mxu0 %v364
  %v1043 = vpop.f32.mrb[0].mxu0
  %v1044 = vadd.f32 %v955, %v1043
  %v1045 = vpop.f32.mrb[0].mxu0
  %v1046 = vpop.f32.mrb[0].mxu0
  %v1047 = vadd.f32 %v956, %v1046
  %v1048 = vpop.f32.mrb[0].mxu0
  %1049 = vmatprep.mubr.bf16.mxu0 0
  %1050 = vmatmul.mubr.bf16.gmra.mrb[0].mxu0 %v365
  %v1051 = vpop.f32.mrb[0].mxu0
  %v1052 = vadd.f32 %v957, %v1051
  %v1053 = vpop.f32.mrb[0].mxu0
  %v1054 = vpop.f32.mrb[0].mxu0
  %v1055 = vadd.f32 %v958, %v1054
  %v1056 = vpop.f32.mrb[0].mxu0
  %1057 = vmatprep.mubr.bf16.mxu0 0
  %1058 = vmatmul.mubr.bf16.gmra.mrb[0].mxu0 %v366
  %v1059 = vpop.f32.mrb[0].mxu0
  %v1060 = vadd.f32 %v959, %v1059
  %v1061 = vpop.f32.mrb[0].mxu0
  %v1062 = vpop.f32.mrb[0].mxu0
  %v1063 = vadd.f32 %v960, %v1062
  %v1064 = vpop.f32.mrb[0].mxu0
  %1065 = vdwg.mxu0
  %v1066 = vpack.c.bf16 %v1007, %v1004
  %v1067 = vpack.c.bf16 %v1015, %v1012
  %v1068 = vpack.c.bf16 %v1023, %v1020
  %v1069 = vpack.c.bf16 %v1031, %v1028
  %v1070 = vpack.c.bf16 %v1039, %v1036
  %v1071 = vpack.c.bf16 %v1047, %v1044
  %v1072 = vpack.c.bf16 %v1055, %v1052
  %v1073 = vpack.c.bf16 %v1063, %v1060
  %1074 = vmatprep.subr.bf16.mxu0 0
  %1075 = vmatpush1.bf16.msra.mxu0 %v1066
  %1076 = vmatprep.subr.bf16.mxu0 0
  %1077 = vmatpush1.bf16.msra.mxu0 %v1067
  %1078 = vmatprep.subr.bf16.mxu0 0
  %1079 = vmatpush1.bf16.msra.mxu0 %v1068
  %1080 = vmatprep.subr.bf16.mxu0 0
  %1081 = vmatpush1.bf16.msra.mxu0 %v1069
  %1082 = vmatprep.subr.bf16.mxu0 0
  %1083 = vmatpush1.bf16.msra.mxu0 %v1070
  %1084 = vmatprep.subr.bf16.mxu0 0
  %1085 = vmatpush1.bf16.msra.mxu0 %v1071
  %1086 = vmatprep.subr.bf16.mxu0 0
  %1087 = vmatpush1.bf16.msra.mxu0 %v1072
  %1088 = vmatprep.subr.bf16.mxu0 0
  %1089 = vmatpush1.bf16.msra.mxu0 %v1073
  %1090 = vmatprep.subr.bf16.mxu0 0
  %1091 = vmatpush1.bf16.msra.mxu0 0
  %1092 = vmatprep.subr.bf16.mxu0 0
  %1093 = vmatpush1.bf16.msra.mxu0 0
  %1094 = vmatprep.subr.bf16.mxu0 0
  %1095 = vmatpush1.bf16.msra.mxu0 0
  %1096 = vmatprep.subr.bf16.mxu0 0
  %1097 = vmatpush1.bf16.msra.mxu0 0
  %1098 = vmatprep.subr.bf16.mxu0 0
  %1099 = vmatpush1.bf16.msra.mxu0 0
  %1100 = vmatprep.subr.bf16.mxu0 0
  %1101 = vmatpush1.bf16.msra.mxu0 0
  %1102 = vmatprep.subr.bf16.mxu0 0
  %1103 = vmatpush1.bf16.msra.mxu0 0
  %1104 = vmatprep.subr.bf16.mxu0 0
  %1105 = vmatpush1.bf16.msra.mxu0 0
  %1106 = vmatprep.mubr.bf16.mxu0 0
  %1107 = vmatmul.mubr.bf16.gmra.mrb[0].mxu0 %v359
  %v1108 = vpop.f32.mrb[0].mxu0
  %v1109 = vadd.f32 %v945, %v1108
  %v1110 = vpop.f32.mrb[0].mxu0
  %v1111 = vpop.f32.mrb[0].mxu0
  %v1112 = vadd.f32 %v946, %v1111
  %v1113 = vpop.f32.mrb[0].mxu0
  %1114 = vmatprep.mubr.bf16.mxu0 0
  %1115 = vmatmul.mubr.bf16.gmra.mrb[0].mxu0 %v360
  %v1116 = vpop.f32.mrb[0].mxu0
  %v1117 = vadd.f32 %v947, %v1116
  %v1118 = vpop.f32.mrb[0].mxu0
  %v1119 = vpop.f32.mrb[0].mxu0
  %v1120 = vadd.f32 %v948, %v1119
  %v1121 = vpop.f32.mrb[0].mxu0
  %1122 = vmatprep.mubr.bf16.mxu0 0
  %1123 = vmatmul.mubr.bf16.gmra.mrb[0].mxu0 %v361
  %v1124 = vpop.f32.mrb[0].mxu0
  %v1125 = vadd.f32 %v949, %v1124
  %v1126 = vpop.f32.mrb[0].mxu0
  %v1127 = vpop.f32.mrb[0].mxu0
  %v1128 = vadd.f32 %v950, %v1127
  %v1129 = vpop.f32.mrb[0].mxu0
  %1130 = vmatprep.mubr.bf16.mxu0 0
  %1131 = vmatmul.mubr.bf16.gmra.mrb[0].mxu0 %v362
  %v1132 = vpop.f32.mrb[0].mxu0
  %v1133 = vadd.f32 %v951, %v1132
  %v1134 = vpop.f32.mrb[0].mxu0
  %v1135 = vpop.f32.mrb[0].mxu0
  %v1136 = vadd.f32 %v952, %v1135
  %v1137 = vpop.f32.mrb[0].mxu0
  %1138 = vmatprep.mubr.bf16.mxu0 0
  %1139 = vmatmul.mubr.bf16.gmra.mrb[0].mxu0 %v363
  %v1140 = vpop.f32.mrb[0].mxu0
  %v1141 = vadd.f32 %v953, %v1140
  %v1142 = vpop.f32.mrb[0].mxu0
  %v1143 = vpop.f32.mrb[0].mxu0
  %v1144 = vadd.f32 %v954, %v1143
  %v1145 = vpop.f32.mrb[0].mxu0
  %1146 = vmatprep.mubr.bf16.mxu0 0
  %1147 = vmatmul.mubr.bf16.gmra.mrb[0].mxu0 %v364
  %v1148 = vpop.f32.mrb[0].mxu0
  %v1149 = vadd.f32 %v955, %v1148
  %v1150 = vpop.f32.mrb[0].mxu0
  %v1151 = vpop.f32.mrb[0].mxu0
  %v1152 = vadd.f32 %v956, %v1151
  %v1153 = vpop.f32.mrb[0].mxu0
  %1154 = vmatprep.mubr.bf16.mxu0 0
  %1155 = vmatmul.mubr.bf16.gmra.mrb[0].mxu0 %v365
  %v1156 = vpop.f32.mrb[0].mxu0
  %v1157 = vadd.f32 %v957, %v1156
  %v1158 = vpop.f32.mrb[0].mxu0
  %v1159 = vpop.f32.mrb[0].mxu0
  %v1160 = vadd.f32 %v958, %v1159
  %v1161 = vpop.f32.mrb[0].mxu0
  %1162 = vmatprep.mubr.bf16.mxu0 0
  %1163 = vmatmul.mubr.bf16.gmra.mrb[0].mxu0 %v366
  %v1164 = vpop.f32.mrb[0].mxu0
  %v1165 = vadd.f32 %v959, %v1164
  %v1166 = vpop.f32.mrb[0].mxu0
  %v1167 = vpop.f32.mrb[0].mxu0
  %v1168 = vadd.f32 %v960, %v1167
  %v1169 = vpop.f32.mrb[0].mxu0
  %1170 = vdwg.mxu0
  %v1171 = vpack.c.bf16 %v1112, %v1109
  %v1172 = vpack.c.bf16 %v1120, %v1117
  %v1173 = vpack.c.bf16 %v1128, %v1125
  %v1174 = vpack.c.bf16 %v1136, %v1133
  %v1175 = vpack.c.bf16 %v1144, %v1141
  %v1176 = vpack.c.bf16 %v1152, %v1149
  %v1177 = vpack.c.bf16 %v1160, %v1157
  %v1178 = vpack.c.bf16 %v1168, %v1165
  %1179 = vmatprep.subr.bf16.mxu0 0
  %1180 = vmatpush1.bf16.msra.mxu0 %v1171
  %1181 = vmatprep.subr.bf16.mxu0 0
  %1182 = vmatpush1.bf16.msra.mxu0 %v1172
  %1183 = vmatprep.subr.bf16.mxu0 0
  %1184 = vmatpush1.bf16.msra.mxu0 %v1173
  %1185 = vmatprep.subr.bf16.mxu0 0
  %1186 = vmatpush1.bf16.msra.mxu0 %v1174
  %1187 = vmatprep.subr.bf16.mxu0 0
  %1188 = vmatpush1.bf16.msra.mxu0 %v1175
  %1189 = vmatprep.subr.bf16.mxu0 0
  %1190 = vmatpush1.bf16.msra.mxu0 %v1176
  %1191 = vmatprep.subr.bf16.mxu0 0
  %1192 = vmatpush1.bf16.msra.mxu0 %v1177
  %1193 = vmatprep.subr.bf16.mxu0 0
  %1194 = vmatpush1.bf16.msra.mxu0 %v1178
  %1195 = vmatprep.subr.bf16.mxu0 0
  %1196 = vmatpush1.bf16.msra.mxu0 0
  %1197 = vmatprep.subr.bf16.mxu0 0
  %1198 = vmatpush1.bf16.msra.mxu0 0
  %1199 = vmatprep.subr.bf16.mxu0 0
  %1200 = vmatpush1.bf16.msra.mxu0 0
  %1201 = vmatprep.subr.bf16.mxu0 0
  %1202 = vmatpush1.bf16.msra.mxu0 0
  %1203 = vmatprep.subr.bf16.mxu0 0
  %1204 = vmatpush1.bf16.msra.mxu0 0
  %1205 = vmatprep.subr.bf16.mxu0 0
  %1206 = vmatpush1.bf16.msra.mxu0 0
  %1207 = vmatprep.subr.bf16.mxu0 0
  %1208 = vmatpush1.bf16.msra.mxu0 0
  %1209 = vmatprep.subr.bf16.mxu0 0
  %1210 = vmatpush1.bf16.msra.mxu0 0
  %1211 = vmatprep.mubr.bf16.mxu0 0
  %1212 = vmatmul.mubr.bf16.gmra.mrb[0].mxu0 %v359
  %v1213 = vpop.f32.mrb[0].mxu0
  %v1214 = vadd.f32 %v945, %v1213
  %v1215 = vpop.f32.mrb[0].mxu0
  %v1216 = vpop.f32.mrb[0].mxu0
  %v1217 = vadd.f32 %v946, %v1216
  %v1218 = vpop.f32.mrb[0].mxu0
  %1219 = vmatprep.mubr.bf16.mxu0 0
  %1220 = vmatmul.mubr.bf16.gmra.mrb[0].mxu0 %v360
  %v1221 = vpop.f32.mrb[0].mxu0
  %v1222 = vadd.f32 %v947, %v1221
  %v1223 = vpop.f32.mrb[0].mxu0
  %v1224 = vpop.f32.mrb[0].mxu0
  %v1225 = vadd.f32 %v948, %v1224
  %v1226 = vpop.f32.mrb[0].mxu0
  %1227 = vmatprep.mubr.bf16.mxu0 0
  %1228 = vmatmul.mubr.bf16.gmra.mrb[0].mxu0 %v361
  %v1229 = vpop.f32.mrb[0].mxu0
  %v1230 = vadd.f32 %v949, %v1229
  %v1231 = vpop.f32.mrb[0].mxu0
  %v1232 = vpop.f32.mrb[0].mxu0
  %v1233 = vadd.f32 %v950, %v1232
  %v1234 = vpop.f32.mrb[0].mxu0
  %1235 = vmatprep.mubr.bf16.mxu0 0
  %1236 = vmatmul.mubr.bf16.gmra.mrb[0].mxu0 %v362
  %v1237 = vpop.f32.mrb[0].mxu0
  %v1238 = vadd.f32 %v951, %v1237
  %v1239 = vpop.f32.mrb[0].mxu0
  %v1240 = vpop.f32.mrb[0].mxu0
  %v1241 = vadd.f32 %v952, %v1240
  %v1242 = vpop.f32.mrb[0].mxu0
  %1243 = vmatprep.mubr.bf16.mxu0 0
  %1244 = vmatmul.mubr.bf16.gmra.mrb[0].mxu0 %v363
  %v1245 = vpop.f32.mrb[0].mxu0
  %v1246 = vadd.f32 %v953, %v1245
  %v1247 = vpop.f32.mrb[0].mxu0
  %v1248 = vpop.f32.mrb[0].mxu0
  %v1249 = vadd.f32 %v954, %v1248
  %v1250 = vpop.f32.mrb[0].mxu0
  %1251 = vmatprep.mubr.bf16.mxu0 0
  %1252 = vmatmul.mubr.bf16.gmra.mrb[0].mxu0 %v364
  %v1253 = vpop.f32.mrb[0].mxu0
  %v1254 = vadd.f32 %v955, %v1253
  %v1255 = vpop.f32.mrb[0].mxu0
  %v1256 = vpop.f32.mrb[0].mxu0
  %v1257 = vadd.f32 %v956, %v1256
  %v1258 = vpop.f32.mrb[0].mxu0
  %1259 = vmatprep.mubr.bf16.mxu0 0
  %1260 = vmatmul.mubr.bf16.gmra.mrb[0].mxu0 %v365
  %v1261 = vpop.f32.mrb[0].mxu0
  %v1262 = vadd.f32 %v957, %v1261
  %v1263 = vpop.f32.mrb[0].mxu0
  %v1264 = vpop.f32.mrb[0].mxu0
  %v1265 = vadd.f32 %v958, %v1264
  %v1266 = vpop.f32.mrb[0].mxu0
  %1267 = vmatprep.mubr.bf16.mxu0 0
  %1268 = vmatmul.mubr.bf16.gmra.mrb[0].mxu0 %v366
  %v1269 = vpop.f32.mrb[0].mxu0
  %v1270 = vadd.f32 %v959, %v1269
  %v1271 = vpop.f32.mrb[0].mxu0
  %v1272 = vpop.f32.mrb[0].mxu0
  %v1273 = vadd.f32 %v960, %v1272
  %v1274 = vpop.f32.mrb[0].mxu0
  %1275 = vdwg.mxu0
  %v1276 = vpack.c.bf16 %v1217, %v1214
  %v1277 = vpack.c.bf16 %v1225, %v1222
  %v1278 = vpack.c.bf16 %v1233, %v1230
  %v1279 = vpack.c.bf16 %v1241, %v1238
  %v1280 = vpack.c.bf16 %v1249, %v1246
  %v1281 = vpack.c.bf16 %v1257, %v1254
  %v1282 = vpack.c.bf16 %v1265, %v1262
  %v1283 = vpack.c.bf16 %v1273, %v1270
  %1284 = vmatprep.subr.bf16.mxu0 0
  %1285 = vmatpush1.bf16.msra.mxu0 %v1276
  %1286 = vmatprep.subr.bf16.mxu0 0
  %1287 = vmatpush1.bf16.msra.mxu0 %v1277
  %1288 = vmatprep.subr.bf16.mxu0 0
  %1289 = vmatpush1.bf16.msra.mxu0 %v1278
  %1290 = vmatprep.subr.bf16.mxu0 0
  %1291 = vmatpush1.bf16.msra.mxu0 %v1279
  %1292 = vmatprep.subr.bf16.mxu0 0
  %1293 = vmatpush1.bf16.msra.mxu0 %v1280
  %1294 = vmatprep.subr.bf16.mxu0 0
  %1295 = vmatpush1.bf16.msra.mxu0 %v1281
  %1296 = vmatprep.subr.bf16.mxu0 0
  %1297 = vmatpush1.bf16.msra.mxu0 %v1282
  %1298 = vmatprep.subr.bf16.mxu0 0
  %1299 = vmatpush1.bf16.msra.mxu0 %v1283
  %1300 = vmatprep.subr.bf16.mxu0 0
  %1301 = vmatpush1.bf16.msra.mxu0 0
  %1302 = vmatprep.subr.bf16.mxu0 0
  %1303 = vmatpush1.bf16.msra.mxu0 0
  %1304 = vmatprep.subr.bf16.mxu0 0
  %1305 = vmatpush1.bf16.msra.mxu0 0
  %1306 = vmatprep.subr.bf16.mxu0 0
  %1307 = vmatpush1.bf16.msra.mxu0 0
  %1308 = vmatprep.subr.bf16.mxu0 0
  %1309 = vmatpush1.bf16.msra.mxu0 0
  %1310 = vmatprep.subr.bf16.mxu0 0
  %1311 = vmatpush1.bf16.msra.mxu0 0
  %1312 = vmatprep.subr.bf16.mxu0 0
  %1313 = vmatpush1.bf16.msra.mxu0 0
  %1314 = vmatprep.subr.bf16.mxu0 0
  %1315 = vmatpush1.bf16.msra.mxu0 0
  %1316 = vmatprep.mubr.bf16.mxu0 0
  %1317 = vmatmul.mubr.bf16.gmra.mrb[0].mxu0 %v359
  %v1318 = vpop.f32.mrb[0].mxu0
  %v1319 = vadd.f32 %v945, %v1318
  %v1320 = vpop.f32.mrb[0].mxu0
  %v1321 = vpop.f32.mrb[0].mxu0
  %v1322 = vadd.f32 %v946, %v1321
  %v1323 = vpop.f32.mrb[0].mxu0
  %1324 = vmatprep.mubr.bf16.mxu0 0
  %1325 = vmatmul.mubr.bf16.gmra.mrb[0].mxu0 %v360
  %v1326 = vpop.f32.mrb[0].mxu0
  %v1327 = vadd.f32 %v947, %v1326
  %v1328 = vpop.f32.mrb[0].mxu0
  %v1329 = vpop.f32.mrb[0].mxu0
  %v1330 = vadd.f32 %v948, %v1329
  %v1331 = vpop.f32.mrb[0].mxu0
  %1332 = vmatprep.mubr.bf16.mxu0 0
  %1333 = vmatmul.mubr.bf16.gmra.mrb[0].mxu0 %v361
  %v1334 = vpop.f32.mrb[0].mxu0
  %v1335 = vadd.f32 %v949, %v1334
  %v1336 = vpop.f32.mrb[0].mxu0
  %v1337 = vpop.f32.mrb[0].mxu0
  %v1338 = vadd.f32 %v950, %v1337
  %v1339 = vpop.f32.mrb[0].mxu0
  %1340 = vmatprep.mubr.bf16.mxu0 0
  %1341 = vmatmul.mubr.bf16.gmra.mrb[0].mxu0 %v362
  %v1342 = vpop.f32.mrb[0].mxu0
  %v1343 = vadd.f32 %v951, %v1342
  %v1344 = vpop.f32.mrb[0].mxu0
  %v1345 = vpop.f32.mrb[0].mxu0
  %v1346 = vadd.f32 %v952, %v1345
  %v1347 = vpop.f32.mrb[0].mxu0
  %1348 = vmatprep.mubr.bf16.mxu0 0
  %1349 = vmatmul.mubr.bf16.gmra.mrb[0].mxu0 %v363
  %v1350 = vpop.f32.mrb[0].mxu0
  %v1351 = vadd.f32 %v953, %v1350
  %v1352 = vpop.f32.mrb[0].mxu0
  %v1353 = vpop.f32.mrb[0].mxu0
  %v1354 = vadd.f32 %v954, %v1353
  %v1355 = vpop.f32.mrb[0].mxu0
  %1356 = vmatprep.mubr.bf16.mxu0 0
  %1357 = vmatmul.mubr.bf16.gmra.mrb[0].mxu0 %v364
  %v1358 = vpop.f32.mrb[0].mxu0
  %v1359 = vadd.f32 %v955, %v1358
  %v1360 = vpop.f32.mrb[0].mxu0
  %v1361 = vpop.f32.mrb[0].mxu0
  %v1362 = vadd.f32 %v956, %v1361
  %v1363 = vpop.f32.mrb[0].mxu0
  %1364 = vmatprep.mubr.bf16.mxu0 0
  %1365 = vmatmul.mubr.bf16.gmra.mrb[0].mxu0 %v365
  %v1366 = vpop.f32.mrb[0].mxu0
  %v1367 = vadd.f32 %v957, %v1366
  %v1368 = vpop.f32.mrb[0].mxu0
  %v1369 = vpop.f32.mrb[0].mxu0
  %v1370 = vadd.f32 %v958, %v1369
  %v1371 = vpop.f32.mrb[0].mxu0
  %1372 = vmatprep.mubr.bf16.mxu0 0
  %1373 = vmatmul.mubr.bf16.gmra.mrb[0].mxu0 %v366
  %v1374 = vpop.f32.mrb[0].mxu0
  %v1375 = vadd.f32 %v959, %v1374
  %v1376 = vpop.f32.mrb[0].mxu0
  %v1377 = vpop.f32.mrb[0].mxu0
  %v1378 = vadd.f32 %v960, %v1377
  %v1379 = vpop.f32.mrb[0].mxu0
  %1380 = vdwg.mxu0
  %v1381 = vpack.c.bf16 %v1322, %v1319
  %v1382 = vpack.c.bf16 %v1330, %v1327
  %v1383 = vpack.c.bf16 %v1338, %v1335
  %v1384 = vpack.c.bf16 %v1346, %v1343
  %v1385 = vpack.c.bf16 %v1354, %v1351
  %v1386 = vpack.c.bf16 %v1362, %v1359
  %v1387 = vpack.c.bf16 %v1370, %v1367
  %v1388 = vpack.c.bf16 %v1378, %v1375
  %1389 = vmatprep.subr.bf16.mxu0 0
  %1390 = vmatpush1.bf16.msra.mxu0 %v1381
  %1391 = vmatprep.subr.bf16.mxu0 0
  %1392 = vmatpush1.bf16.msra.mxu0 %v1382
  %1393 = vmatprep.subr.bf16.mxu0 0
  %1394 = vmatpush1.bf16.msra.mxu0 %v1383
  %1395 = vmatprep.subr.bf16.mxu0 0
  %1396 = vmatpush1.bf16.msra.mxu0 %v1384
  %1397 = vmatprep.subr.bf16.mxu0 0
  %1398 = vmatpush1.bf16.msra.mxu0 %v1385
  %1399 = vmatprep.subr.bf16.mxu0 0
  %1400 = vmatpush1.bf16.msra.mxu0 %v1386
  %1401 = vmatprep.subr.bf16.mxu0 0
  %1402 = vmatpush1.bf16.msra.mxu0 %v1387
  %1403 = vmatprep.subr.bf16.mxu0 0
  %1404 = vmatpush1.bf16.msra.mxu0 %v1388
  %1405 = vmatprep.subr.bf16.mxu0 0
  %1406 = vmatpush1.bf16.msra.mxu0 0
  %1407 = vmatprep.subr.bf16.mxu0 0
  %1408 = vmatpush1.bf16.msra.mxu0 0
  %1409 = vmatprep.subr.bf16.mxu0 0
  %1410 = vmatpush1.bf16.msra.mxu0 0
  %1411 = vmatprep.subr.bf16.mxu0 0
  %1412 = vmatpush1.bf16.msra.mxu0 0
  %1413 = vmatprep.subr.bf16.mxu0 0
  %1414 = vmatpush1.bf16.msra.mxu0 0
  %1415 = vmatprep.subr.bf16.mxu0 0
  %1416 = vmatpush1.bf16.msra.mxu0 0
  %1417 = vmatprep.subr.bf16.mxu0 0
  %1418 = vmatpush1.bf16.msra.mxu0 0
  %1419 = vmatprep.subr.bf16.mxu0 0
  %1420 = vmatpush1.bf16.msra.mxu0 0
  %1421 = vmatprep.mubr.bf16.mxu0 0
  %1422 = vmatmul.mubr.bf16.gmra.mrb[0].mxu0 %v359
  %v1423 = vpop.f32.mrb[0].mxu0
  %v1424 = vadd.f32 %v945, %v1423
  %v1425 = vpop.f32.mrb[0].mxu0
  %v1426 = vpop.f32.mrb[0].mxu0
  %v1427 = vadd.f32 %v946, %v1426
  %v1428 = vpop.f32.mrb[0].mxu0
  %1429 = vmatprep.mubr.bf16.mxu0 0
  %1430 = vmatmul.mubr.bf16.gmra.mrb[0].mxu0 %v360
  %v1431 = vpop.f32.mrb[0].mxu0
  %v1432 = vadd.f32 %v947, %v1431
  %v1433 = vpop.f32.mrb[0].mxu0
  %v1434 = vpop.f32.mrb[0].mxu0
  %v1435 = vadd.f32 %v948, %v1434
  %v1436 = vpop.f32.mrb[0].mxu0
  %1437 = vmatprep.mubr.bf16.mxu0 0
  %1438 = vmatmul.mubr.bf16.gmra.mrb[0].mxu0 %v361
  %v1439 = vpop.f32.mrb[0].mxu0
  %v1440 = vadd.f32 %v949, %v1439
  %v1441 = vpop.f32.mrb[0].mxu0
  %v1442 = vpop.f32.mrb[0].mxu0
  %v1443 = vadd.f32 %v950, %v1442
  %v1444 = vpop.f32.mrb[0].mxu0
  %1445 = vmatprep.mubr.bf16.mxu0 0
  %1446 = vmatmul.mubr.bf16.gmra.mrb[0].mxu0 %v362
  %v1447 = vpop.f32.mrb[0].mxu0
  %v1448 = vadd.f32 %v951, %v1447
  %v1449 = vpop.f32.mrb[0].mxu0
  %v1450 = vpop.f32.mrb[0].mxu0
  %v1451 = vadd.f32 %v952, %v1450
  %v1452 = vpop.f32.mrb[0].mxu0
  %1453 = vmatprep.mubr.bf16.mxu0 0
  %1454 = vmatmul.mubr.bf16.gmra.mrb[0].mxu0 %v363
  %v1455 = vpop.f32.mrb[0].mxu0
  %v1456 = vadd.f32 %v953, %v1455
  %v1457 = vpop.f32.mrb[0].mxu0
  %v1458 = vpop.f32.mrb[0].mxu0
  %v1459 = vadd.f32 %v954, %v1458
  %v1460 = vpop.f32.mrb[0].mxu0
  %1461 = vmatprep.mubr.bf16.mxu0 0
  %1462 = vmatmul.mubr.bf16.gmra.mrb[0].mxu0 %v364
  %v1463 = vpop.f32.mrb[0].mxu0
  %v1464 = vadd.f32 %v955, %v1463
  %v1465 = vpop.f32.mrb[0].mxu0
  %v1466 = vpop.f32.mrb[0].mxu0
  %v1467 = vadd.f32 %v956, %v1466
  %v1468 = vpop.f32.mrb[0].mxu0
  %1469 = vmatprep.mubr.bf16.mxu0 0
  %1470 = vmatmul.mubr.bf16.gmra.mrb[0].mxu0 %v365
  %v1471 = vpop.f32.mrb[0].mxu0
  %v1472 = vadd.f32 %v957, %v1471
  %v1473 = vpop.f32.mrb[0].mxu0
  %v1474 = vpop.f32.mrb[0].mxu0
  %v1475 = vadd.f32 %v958, %v1474
  %v1476 = vpop.f32.mrb[0].mxu0
  %1477 = vmatprep.mubr.bf16.mxu0 0
  %1478 = vmatmul.mubr.bf16.gmra.mrb[0].mxu0 %v366
  %v1479 = vpop.f32.mrb[0].mxu0
  %v1480 = vadd.f32 %v959, %v1479
  %v1481 = vpop.f32.mrb[0].mxu0
  %v1482 = vpop.f32.mrb[0].mxu0
  %v1483 = vadd.f32 %v960, %v1482
  %v1484 = vpop.f32.mrb[0].mxu0
  %1485 = vdwg.mxu0
  %v1486 = vpack.c.bf16 %v1427, %v1424
  %v1487 = vpack.c.bf16 %v1435, %v1432
  %v1488 = vpack.c.bf16 %v1443, %v1440
  %v1489 = vpack.c.bf16 %v1451, %v1448
  %v1490 = vpack.c.bf16 %v1459, %v1456
  %v1491 = vpack.c.bf16 %v1467, %v1464
  %v1492 = vpack.c.bf16 %v1475, %v1472
  %v1493 = vpack.c.bf16 %v1483, %v1480
  %1494 = vmatprep.subr.bf16.mxu0 0
  %1495 = vmatpush1.bf16.msra.mxu0 %v1486
  %1496 = vmatprep.subr.bf16.mxu0 0
  %1497 = vmatpush1.bf16.msra.mxu0 %v1487
  %1498 = vmatprep.subr.bf16.mxu0 0
  %1499 = vmatpush1.bf16.msra.mxu0 %v1488
  %1500 = vmatprep.subr.bf16.mxu0 0
  %1501 = vmatpush1.bf16.msra.mxu0 %v1489
  %1502 = vmatprep.subr.bf16.mxu0 0
  %1503 = vmatpush1.bf16.msra.mxu0 %v1490
  %1504 = vmatprep.subr.bf16.mxu0 0
  %1505 = vmatpush1.bf16.msra.mxu0 %v1491
  %1506 = vmatprep.subr.bf16.mxu0 0
  %1507 = vmatpush1.bf16.msra.mxu0 %v1492
  %1508 = vmatprep.subr.bf16.mxu0 0
  %1509 = vmatpush1.bf16.msra.mxu0 %v1493
  %1510 = vmatprep.subr.bf16.mxu0 0
  %1511 = vmatpush1.bf16.msra.mxu0 0
  %1512 = vmatprep.subr.bf16.mxu0 0
  %1513 = vmatpush1.bf16.msra.mxu0 0
  %1514 = vmatprep.subr.bf16.mxu0 0
  %1515 = vmatpush1.bf16.msra.mxu0 0
  %1516 = vmatprep.subr.bf16.mxu0 0
  %1517 = vmatpush1.bf16.msra.mxu0 0
  %1518 = vmatprep.subr.bf16.mxu0 0
  %1519 = vmatpush1.bf16.msra.mxu0 0
  %1520 = vmatprep.subr.bf16.mxu0 0
  %1521 = vmatpush1.bf16.msra.mxu0 0
  %1522 = vmatprep.subr.bf16.mxu0 0
  %1523 = vmatpush1.bf16.msra.mxu0 0
  %1524 = vmatprep.subr.bf16.mxu0 0
  %1525 = vmatpush1.bf16.msra.mxu0 0
  %1526 = vmatprep.mubr.bf16.mxu0 0
  %1527 = vmatmul.mubr.bf16.gmra.mrb[0].mxu0 %v359
  %v1528 = vpop.f32.mrb[0].mxu0
  %v1529 = vadd.f32 %v945, %v1528
  %v1530 = vpop.f32.mrb[0].mxu0
  %v1531 = vpop.f32.mrb[0].mxu0
  %v1532 = vadd.f32 %v946, %v1531
  %v1533 = vpop.f32.mrb[0].mxu0
  %1534 = vmatprep.mubr.bf16.mxu0 0
  %1535 = vmatmul.mubr.bf16.gmra.mrb[0].mxu0 %v360
  %v1536 = vpop.f32.mrb[0].mxu0
  %v1537 = vadd.f32 %v947, %v1536
  %v1538 = vpop.f32.mrb[0].mxu0
  %v1539 = vpop.f32.mrb[0].mxu0
  %v1540 = vadd.f32 %v948, %v1539
  %v1541 = vpop.f32.mrb[0].mxu0
  %1542 = vmatprep.mubr.bf16.mxu0 0
  %1543 = vmatmul.mubr.bf16.gmra.mrb[0].mxu0 %v361
  %v1544 = vpop.f32.mrb[0].mxu0
  %v1545 = vadd.f32 %v949, %v1544
  %v1546 = vpop.f32.mrb[0].mxu0
  %v1547 = vpop.f32.mrb[0].mxu0
  %v1548 = vadd.f32 %v950, %v1547
  %v1549 = vpop.f32.mrb[0].mxu0
  %1550 = vmatprep.mubr.bf16.mxu0 0
  %1551 = vmatmul.mubr.bf16.gmra.mrb[0].mxu0 %v362
  %v1552 = vpop.f32.mrb[0].mxu0
  %v1553 = vadd.f32 %v951, %v1552
  %v1554 = vpop.f32.mrb[0].mxu0
  %v1555 = vpop.f32.mrb[0].mxu0
  %v1556 = vadd.f32 %v952, %v1555
  %v1557 = vpop.f32.mrb[0].mxu0
  %1558 = vmatprep.mubr.bf16.mxu0 0
  %1559 = vmatmul.mubr.bf16.gmra.mrb[0].mxu0 %v363
  %v1560 = vpop.f32.mrb[0].mxu0
  %v1561 = vadd.f32 %v953, %v1560
  %v1562 = vpop.f32.mrb[0].mxu0
  %v1563 = vpop.f32.mrb[0].mxu0
  %v1564 = vadd.f32 %v954, %v1563
  %v1565 = vpop.f32.mrb[0].mxu0
  %1566 = vmatprep.mubr.bf16.mxu0 0
  %1567 = vmatmul.mubr.bf16.gmra.mrb[0].mxu0 %v364
  %v1568 = vpop.f32.mrb[0].mxu0
  %v1569 = vadd.f32 %v955, %v1568
  %v1570 = vpop.f32.mrb[0].mxu0
  %v1571 = vpop.f32.mrb[0].mxu0
  %v1572 = vadd.f32 %v956, %v1571
  %v1573 = vpop.f32.mrb[0].mxu0
  %1574 = vmatprep.mubr.bf16.mxu0 0
  %1575 = vmatmul.mubr.bf16.gmra.mrb[0].mxu0 %v365
  %v1576 = vpop.f32.mrb[0].mxu0
  %v1577 = vadd.f32 %v957, %v1576
  %v1578 = vpop.f32.mrb[0].mxu0
  %v1579 = vpop.f32.mrb[0].mxu0
  %v1580 = vadd.f32 %v958, %v1579
  %v1581 = vpop.f32.mrb[0].mxu0
  %1582 = vmatprep.mubr.bf16.mxu0 0
  %1583 = vmatmul.mubr.bf16.gmra.mrb[0].mxu0 %v366
  %v1584 = vpop.f32.mrb[0].mxu0
  %v1585 = vadd.f32 %v959, %v1584
  %v1586 = vpop.f32.mrb[0].mxu0
  %v1587 = vpop.f32.mrb[0].mxu0
  %v1588 = vadd.f32 %v960, %v1587
  %v1589 = vpop.f32.mrb[0].mxu0
  %1590 = vdwg.mxu0
  %v1591 = vpack.c.bf16 %v1532, %v1529
  %v1592 = vpack.c.bf16 %v1540, %v1537
  %v1593 = vpack.c.bf16 %v1548, %v1545
  %v1594 = vpack.c.bf16 %v1556, %v1553
  %v1595 = vpack.c.bf16 %v1564, %v1561
  %v1596 = vpack.c.bf16 %v1572, %v1569
  %v1597 = vpack.c.bf16 %v1580, %v1577
  %v1598 = vpack.c.bf16 %v1588, %v1585
  %1599 = vmatprep.subr.bf16.mxu0 0
  %1600 = vmatpush1.bf16.msra.mxu0 %v1591
  %1601 = vmatprep.subr.bf16.mxu0 0
  %1602 = vmatpush1.bf16.msra.mxu0 %v1592
  %1603 = vmatprep.subr.bf16.mxu0 0
  %1604 = vmatpush1.bf16.msra.mxu0 %v1593
  %1605 = vmatprep.subr.bf16.mxu0 0
  %1606 = vmatpush1.bf16.msra.mxu0 %v1594
  %1607 = vmatprep.subr.bf16.mxu0 0
  %1608 = vmatpush1.bf16.msra.mxu0 %v1595
  %1609 = vmatprep.subr.bf16.mxu0 0
  %1610 = vmatpush1.bf16.msra.mxu0 %v1596
  %1611 = vmatprep.subr.bf16.mxu0 0
  %1612 = vmatpush1.bf16.msra.mxu0 %v1597
  %1613 = vmatprep.subr.bf16.mxu0 0
  %1614 = vmatpush1.bf16.msra.mxu0 %v1598
  %1615 = vmatprep.subr.bf16.mxu0 0
  %1616 = vmatpush1.bf16.msra.mxu0 0
  %1617 = vmatprep.subr.bf16.mxu0 0
  %1618 = vmatpush1.bf16.msra.mxu0 0
  %1619 = vmatprep.subr.bf16.mxu0 0
  %1620 = vmatpush1.bf16.msra.mxu0 0
  %1621 = vmatprep.subr.bf16.mxu0 0
  %1622 = vmatpush1.bf16.msra.mxu0 0
  %1623 = vmatprep.subr.bf16.mxu0 0
  %1624 = vmatpush1.bf16.msra.mxu0 0
  %1625 = vmatprep.subr.bf16.mxu0 0
  %1626 = vmatpush1.bf16.msra.mxu0 0
  %1627 = vmatprep.subr.bf16.mxu0 0
  %1628 = vmatpush1.bf16.msra.mxu0 0
  %1629 = vmatprep.subr.bf16.mxu0 0
  %1630 = vmatpush1.bf16.msra.mxu0 0
  %1631 = vmatprep.mubr.bf16.mxu0 0
  %1632 = vmatmul.mubr.bf16.gmra.mrb[0].mxu0 %v359
  %v1633 = vpop.f32.mrb[0].mxu0
  %v1634 = vadd.f32 %v945, %v1633
  %v1635 = vpop.f32.mrb[0].mxu0
  %v1636 = vpop.f32.mrb[0].mxu0
  %v1637 = vadd.f32 %v946, %v1636
  %v1638 = vpop.f32.mrb[0].mxu0
  %1639 = vmatprep.mubr.bf16.mxu0 0
  %1640 = vmatmul.mubr.bf16.gmra.mrb[0].mxu0 %v360
  %v1641 = vpop.f32.mrb[0].mxu0
  %v1642 = vadd.f32 %v947, %v1641
  %v1643 = vpop.f32.mrb[0].mxu0
  %v1644 = vpop.f32.mrb[0].mxu0
  %v1645 = vadd.f32 %v948, %v1644
  %v1646 = vpop.f32.mrb[0].mxu0
  %1647 = vmatprep.mubr.bf16.mxu0 0
  %1648 = vmatmul.mubr.bf16.gmra.mrb[0].mxu0 %v361
  %v1649 = vpop.f32.mrb[0].mxu0
  %v1650 = vadd.f32 %v949, %v1649
  %v1651 = vpop.f32.mrb[0].mxu0
  %v1652 = vpop.f32.mrb[0].mxu0
  %v1653 = vadd.f32 %v950, %v1652
  %v1654 = vpop.f32.mrb[0].mxu0
  %1655 = vmatprep.mubr.bf16.mxu0 0
  %1656 = vmatmul.mubr.bf16.gmra.mrb[0].mxu0 %v362
  %v1657 = vpop.f32.mrb[0].mxu0
  %v1658 = vadd.f32 %v951, %v1657
  %v1659 = vpop.f32.mrb[0].mxu0
  %v1660 = vpop.f32.mrb[0].mxu0
  %v1661 = vadd.f32 %v952, %v1660
  %v1662 = vpop.f32.mrb[0].mxu0
  %1663 = vmatprep.mubr.bf16.mxu0 0
  %1664 = vmatmul.mubr.bf16.gmra.mrb[0].mxu0 %v363
  %v1665 = vpop.f32.mrb[0].mxu0
  %v1666 = vadd.f32 %v953, %v1665
  %v1667 = vpop.f32.mrb[0].mxu0
  %v1668 = vpop.f32.mrb[0].mxu0
  %v1669 = vadd.f32 %v954, %v1668
  %v1670 = vpop.f32.mrb[0].mxu0
  %1671 = vmatprep.mubr.bf16.mxu0 0
  %1672 = vmatmul.mubr.bf16.gmra.mrb[0].mxu0 %v364
  %v1673 = vpop.f32.mrb[0].mxu0
  %v1674 = vadd.f32 %v955, %v1673
  %v1675 = vpop.f32.mrb[0].mxu0
  %v1676 = vpop.f32.mrb[0].mxu0
  %v1677 = vadd.f32 %v956, %v1676
  %v1678 = vpop.f32.mrb[0].mxu0
  %1679 = vmatprep.mubr.bf16.mxu0 0
  %1680 = vmatmul.mubr.bf16.gmra.mrb[0].mxu0 %v365
  %v1681 = vpop.f32.mrb[0].mxu0
  %v1682 = vadd.f32 %v957, %v1681
  %v1683 = vpop.f32.mrb[0].mxu0
  %v1684 = vpop.f32.mrb[0].mxu0
  %v1685 = vadd.f32 %v958, %v1684
  %v1686 = vpop.f32.mrb[0].mxu0
  %1687 = vmatprep.mubr.bf16.mxu0 0
  %1688 = vmatmul.mubr.bf16.gmra.mrb[0].mxu0 %v366
  %v1689 = vpop.f32.mrb[0].mxu0
  %v1690 = vadd.f32 %v959, %v1689
  %v1691 = vpop.f32.mrb[0].mxu0
  %v1692 = vpop.f32.mrb[0].mxu0
  %v1693 = vadd.f32 %v960, %v1692
  %v1694 = vpop.f32.mrb[0].mxu0
  %1695 = vdwg.mxu0
  %v1696 = vpack.c.bf16 %v1637, %v1634
  %v1697 = vpack.c.bf16 %v1645, %v1642
  %v1698 = vpack.c.bf16 %v1653, %v1650
  %v1699 = vpack.c.bf16 %v1661, %v1658
  %v1700 = vpack.c.bf16 %v1669, %v1666
  %v1701 = vpack.c.bf16 %v1677, %v1674
  %v1702 = vpack.c.bf16 %v1685, %v1682
  %v1703 = vpack.c.bf16 %v1693, %v1690
  %1704 = vmatprep.subr.bf16.mxu0 0
  %1705 = vmatpush1.bf16.msra.mxu0 %v1696
  %1706 = vmatprep.subr.bf16.mxu0 0
  %1707 = vmatpush1.bf16.msra.mxu0 %v1697
  %1708 = vmatprep.subr.bf16.mxu0 0
  %1709 = vmatpush1.bf16.msra.mxu0 %v1698
  %1710 = vmatprep.subr.bf16.mxu0 0
  %1711 = vmatpush1.bf16.msra.mxu0 %v1699
  %1712 = vmatprep.subr.bf16.mxu0 0
  %1713 = vmatpush1.bf16.msra.mxu0 %v1700
  %1714 = vmatprep.subr.bf16.mxu0 0
  %1715 = vmatpush1.bf16.msra.mxu0 %v1701
  %1716 = vmatprep.subr.bf16.mxu0 0
  %1717 = vmatpush1.bf16.msra.mxu0 %v1702
  %1718 = vmatprep.subr.bf16.mxu0 0
  %1719 = vmatpush1.bf16.msra.mxu0 %v1703
  %1720 = vmatprep.subr.bf16.mxu0 0
  %1721 = vmatpush1.bf16.msra.mxu0 0
  %1722 = vmatprep.subr.bf16.mxu0 0
  %1723 = vmatpush1.bf16.msra.mxu0 0
  %1724 = vmatprep.subr.bf16.mxu0 0
  %1725 = vmatpush1.bf16.msra.mxu0 0
  %1726 = vmatprep.subr.bf16.mxu0 0
  %1727 = vmatpush1.bf16.msra.mxu0 0
  %1728 = vmatprep.subr.bf16.mxu0 0
  %1729 = vmatpush1.bf16.msra.mxu0 0
  %1730 = vmatprep.subr.bf16.mxu0 0
  %1731 = vmatpush1.bf16.msra.mxu0 0
  %1732 = vmatprep.subr.bf16.mxu0 0
  %1733 = vmatpush1.bf16.msra.mxu0 0
  %1734 = vmatprep.subr.bf16.mxu0 0
  %1735 = vmatpush1.bf16.msra.mxu0 0
  %1736 = vmatprep.mubr.bf16.mxu0 0
  %1737 = vmatmul.mubr.bf16.gmra.mrb[0].mxu0 %v359
  %v1738 = vpop.f32.mrb[0].mxu0
  %v1739 = vadd.f32 %v945, %v1738
  %v1740 = vpop.f32.mrb[0].mxu0
  %v1741 = vpop.f32.mrb[0].mxu0
  %v1742 = vadd.f32 %v946, %v1741
  %v1743 = vpop.f32.mrb[0].mxu0
  %1744 = vmatprep.mubr.bf16.mxu0 0
  %1745 = vmatmul.mubr.bf16.gmra.mrb[0].mxu0 %v360
  %v1746 = vpop.f32.mrb[0].mxu0
  %v1747 = vadd.f32 %v947, %v1746
  %v1748 = vpop.f32.mrb[0].mxu0
  %v1749 = vpop.f32.mrb[0].mxu0
  %v1750 = vadd.f32 %v948, %v1749
  %v1751 = vpop.f32.mrb[0].mxu0
  %1752 = vmatprep.mubr.bf16.mxu0 0
  %1753 = vmatmul.mubr.bf16.gmra.mrb[0].mxu0 %v361
  %v1754 = vpop.f32.mrb[0].mxu0
  %v1755 = vadd.f32 %v949, %v1754
  %v1756 = vpop.f32.mrb[0].mxu0
  %v1757 = vpop.f32.mrb[0].mxu0
  %v1758 = vadd.f32 %v950, %v1757
  %v1759 = vpop.f32.mrb[0].mxu0
  %1760 = vmatprep.mubr.bf16.mxu0 0
  %1761 = vmatmul.mubr.bf16.gmra.mrb[0].mxu0 %v362
  %v1762 = vpop.f32.mrb[0].mxu0
  %v1763 = vadd.f32 %v951, %v1762
  %v1764 = vpop.f32.mrb[0].mxu0
  %v1765 = vpop.f32.mrb[0].mxu0
  %v1766 = vadd.f32 %v952, %v1765
  %v1767 = vpop.f32.mrb[0].mxu0
  %1768 = vmatprep.mubr.bf16.mxu0 0
  %1769 = vmatmul.mubr.bf16.gmra.mrb[0].mxu0 %v363
  %v1770 = vpop.f32.mrb[0].mxu0
  %v1771 = vadd.f32 %v953, %v1770
  %v1772 = vpop.f32.mrb[0].mxu0
  %v1773 = vpop.f32.mrb[0].mxu0
  %v1774 = vadd.f32 %v954, %v1773
  %v1775 = vpop.f32.mrb[0].mxu0
  %1776 = vmatprep.mubr.bf16.mxu0 0
  %1777 = vmatmul.mubr.bf16.gmra.mrb[0].mxu0 %v364
  %v1778 = vpop.f32.mrb[0].mxu0
  %v1779 = vadd.f32 %v955, %v1778
  %v1780 = vpop.f32.mrb[0].mxu0
  %v1781 = vpop.f32.mrb[0].mxu0
  %v1782 = vadd.f32 %v956, %v1781
  %v1783 = vpop.f32.mrb[0].mxu0
  %1784 = vmatprep.mubr.bf16.mxu0 0
  %1785 = vmatmul.mubr.bf16.gmra.mrb[0].mxu0 %v365
  %v1786 = vpop.f32.mrb[0].mxu0
  %v1787 = vadd.f32 %v957, %v1786
  %v1788 = vpop.f32.mrb[0].mxu0
  %v1789 = vpop.f32.mrb[0].mxu0
  %v1790 = vadd.f32 %v958, %v1789
  %v1791 = vpop.f32.mrb[0].mxu0
  %1792 = vmatprep.mubr.bf16.mxu0 0
  %1793 = vmatmul.mubr.bf16.gmra.mrb[0].mxu0 %v366
  %v1794 = vpop.f32.mrb[0].mxu0
  %v1795 = vadd.f32 %v959, %v1794
  %v1796 = vpop.f32.mrb[0].mxu0
  %v1797 = vpop.f32.mrb[0].mxu0
  %v1798 = vadd.f32 %v960, %v1797
  %v1799 = vpop.f32.mrb[0].mxu0
  %1800 = vdwg.mxu0
  %v1801 = vpack.c.bf16 %v1742, %v1739
  %v1802 = vpack.c.bf16 %v1750, %v1747
  %v1803 = vpack.c.bf16 %v1758, %v1755
  %v1804 = vpack.c.bf16 %v1766, %v1763
  %v1805 = vpack.c.bf16 %v1774, %v1771
  %v1806 = vpack.c.bf16 %v1782, %v1779
  %v1807 = vpack.c.bf16 %v1790, %v1787
  %v1808 = vpack.c.bf16 %v1798, %v1795
  %1809 = vmatprep.subr.bf16.mxu0 0
  %1810 = vmatpush1.bf16.msra.mxu0 %v1801
  %1811 = vmatprep.subr.bf16.mxu0 0
  %1812 = vmatpush1.bf16.msra.mxu0 %v1802
  %1813 = vmatprep.subr.bf16.mxu0 0
  %1814 = vmatpush1.bf16.msra.mxu0 %v1803
  %1815 = vmatprep.subr.bf16.mxu0 0
  %1816 = vmatpush1.bf16.msra.mxu0 %v1804
  %1817 = vmatprep.subr.bf16.mxu0 0
  %1818 = vmatpush1.bf16.msra.mxu0 %v1805
  %1819 = vmatprep.subr.bf16.mxu0 0
  %1820 = vmatpush1.bf16.msra.mxu0 %v1806
  %1821 = vmatprep.subr.bf16.mxu0 0
  %1822 = vmatpush1.bf16.msra.mxu0 %v1807
  %1823 = vmatprep.subr.bf16.mxu0 0
  %1824 = vmatpush1.bf16.msra.mxu0 %v1808
  %1825 = vmatprep.subr.bf16.mxu0 0
  %1826 = vmatpush1.bf16.msra.mxu0 0
  %1827 = vmatprep.subr.bf16.mxu0 0
  %1828 = vmatpush1.bf16.msra.mxu0 0
  %1829 = vmatprep.subr.bf16.mxu0 0
  %1830 = vmatpush1.bf16.msra.mxu0 0
  %1831 = vmatprep.subr.bf16.mxu0 0
  %1832 = vmatpush1.bf16.msra.mxu0 0
  %1833 = vmatprep.subr.bf16.mxu0 0
  %1834 = vmatpush1.bf16.msra.mxu0 0
  %1835 = vmatprep.subr.bf16.mxu0 0
  %1836 = vmatpush1.bf16.msra.mxu0 0
  %1837 = vmatprep.subr.bf16.mxu0 0
  %1838 = vmatpush1.bf16.msra.mxu0 0
  %1839 = vmatprep.subr.bf16.mxu0 0
  %1840 = vmatpush1.bf16.msra.mxu0 0
  %1841 = vmatprep.mubr.bf16.mxu0 0
  %1842 = vmatmul.mubr.bf16.gmra.mrb[0].mxu0 %v359
  %v1843 = vpop.f32.mrb[0].mxu0
  %v1844 = vadd.f32 %v945, %v1843
  %v1845 = vpop.f32.mrb[0].mxu0
  %v1846 = vpop.f32.mrb[0].mxu0
  %v1847 = vadd.f32 %v946, %v1846
  %v1848 = vpop.f32.mrb[0].mxu0
  %1849 = vmatprep.mubr.bf16.mxu0 0
  %1850 = vmatmul.mubr.bf16.gmra.mrb[0].mxu0 %v360
  %v1851 = vpop.f32.mrb[0].mxu0
  %v1852 = vadd.f32 %v947, %v1851
  %v1853 = vpop.f32.mrb[0].mxu0
  %v1854 = vpop.f32.mrb[0].mxu0
  %v1855 = vadd.f32 %v948, %v1854
  %v1856 = vpop.f32.mrb[0].mxu0
  %1857 = vmatprep.mubr.bf16.mxu0 0
  %1858 = vmatmul.mubr.bf16.gmra.mrb[0].mxu0 %v361
  %v1859 = vpop.f32.mrb[0].mxu0
  %v1860 = vadd.f32 %v949, %v1859
  %v1861 = vpop.f32.mrb[0].mxu0
  %v1862 = vpop.f32.mrb[0].mxu0
  %v1863 = vadd.f32 %v950, %v1862
  %v1864 = vpop.f32.mrb[0].mxu0
  %1865 = vmatprep.mubr.bf16.mxu0 0
  %1866 = vmatmul.mubr.bf16.gmra.mrb[0].mxu0 %v362
  %v1867 = vpop.f32.mrb[0].mxu0
  %v1868 = vadd.f32 %v951, %v1867
  %v1869 = vpop.f32.mrb[0].mxu0
  %v1870 = vpop.f32.mrb[0].mxu0
  %v1871 = vadd.f32 %v952, %v1870
  %v1872 = vpop.f32.mrb[0].mxu0
  %1873 = vmatprep.mubr.bf16.mxu0 0
  %1874 = vmatmul.mubr.bf16.gmra.mrb[0].mxu0 %v363
  %v1875 = vpop.f32.mrb[0].mxu0
  %v1876 = vadd.f32 %v953, %v1875
  %v1877 = vpop.f32.mrb[0].mxu0
  %v1878 = vpop.f32.mrb[0].mxu0
  %v1879 = vadd.f32 %v954, %v1878
  %v1880 = vpop.f32.mrb[0].mxu0
  %1881 = vmatprep.mubr.bf16.mxu0 0
  %1882 = vmatmul.mubr.bf16.gmra.mrb[0].mxu0 %v364
  %v1883 = vpop.f32.mrb[0].mxu0
  %v1884 = vadd.f32 %v955, %v1883
  %v1885 = vpop.f32.mrb[0].mxu0
  %v1886 = vpop.f32.mrb[0].mxu0
  %v1887 = vadd.f32 %v956, %v1886
  %v1888 = vpop.f32.mrb[0].mxu0
  %1889 = vmatprep.mubr.bf16.mxu0 0
  %1890 = vmatmul.mubr.bf16.gmra.mrb[0].mxu0 %v365
  %v1891 = vpop.f32.mrb[0].mxu0
  %v1892 = vadd.f32 %v957, %v1891
  %v1893 = vpop.f32.mrb[0].mxu0
  %v1894 = vpop.f32.mrb[0].mxu0
  %v1895 = vadd.f32 %v958, %v1894
  %v1896 = vpop.f32.mrb[0].mxu0
  %1897 = vmatprep.mubr.bf16.mxu0 0
  %1898 = vmatmul.mubr.bf16.gmra.mrb[0].mxu0 %v366
  %v1899 = vpop.f32.mrb[0].mxu0
  %v1900 = vadd.f32 %v959, %v1899
  %v1901 = vpop.f32.mrb[0].mxu0
  %v1902 = vpop.f32.mrb[0].mxu0
  %v1903 = vadd.f32 %v960, %v1902
  %v1904 = vpop.f32.mrb[0].mxu0
  %1905 = vdwg.mxu0
  %v1906 = vpack.c.bf16 %v1847, %v1844
  %v1907 = vpack.c.bf16 %v1855, %v1852
  %v1908 = vpack.c.bf16 %v1863, %v1860
  %v1909 = vpack.c.bf16 %v1871, %v1868
  %v1910 = vpack.c.bf16 %v1879, %v1876
  %v1911 = vpack.c.bf16 %v1887, %v1884
  %v1912 = vpack.c.bf16 %v1895, %v1892
  %v1913 = vpack.c.bf16 %v1903, %v1900
  %1914 = vmatprep.subr.bf16.mxu0 0
  %1915 = vmatpush1.bf16.msra.mxu0 %v1906
  %1916 = vmatprep.subr.bf16.mxu0 0
  %1917 = vmatpush1.bf16.msra.mxu0 %v1907
  %1918 = vmatprep.subr.bf16.mxu0 0
  %1919 = vmatpush1.bf16.msra.mxu0 %v1908
  %1920 = vmatprep.subr.bf16.mxu0 0
  %1921 = vmatpush1.bf16.msra.mxu0 %v1909
  %1922 = vmatprep.subr.bf16.mxu0 0
  %1923 = vmatpush1.bf16.msra.mxu0 %v1910
  %1924 = vmatprep.subr.bf16.mxu0 0
  %1925 = vmatpush1.bf16.msra.mxu0 %v1911
  %1926 = vmatprep.subr.bf16.mxu0 0
  %1927 = vmatpush1.bf16.msra.mxu0 %v1912
  %1928 = vmatprep.subr.bf16.mxu0 0
  %1929 = vmatpush1.bf16.msra.mxu0 %v1913
  %1930 = vmatprep.subr.bf16.mxu0 0
  %1931 = vmatpush1.bf16.msra.mxu0 0
  %1932 = vmatprep.subr.bf16.mxu0 0
  %1933 = vmatpush1.bf16.msra.mxu0 0
  %1934 = vmatprep.subr.bf16.mxu0 0
  %1935 = vmatpush1.bf16.msra.mxu0 0
  %1936 = vmatprep.subr.bf16.mxu0 0
  %1937 = vmatpush1.bf16.msra.mxu0 0
  %1938 = vmatprep.subr.bf16.mxu0 0
  %1939 = vmatpush1.bf16.msra.mxu0 0
  %1940 = vmatprep.subr.bf16.mxu0 0
  %1941 = vmatpush1.bf16.msra.mxu0 0
  %1942 = vmatprep.subr.bf16.mxu0 0
  %1943 = vmatpush1.bf16.msra.mxu0 0
  %1944 = vmatprep.subr.bf16.mxu0 0
  %1945 = vmatpush1.bf16.msra.mxu0 0
  %1946 = vmatprep.mubr.bf16.mxu0 0
  %1947 = vmatmul.mubr.bf16.gmra.mrb[0].mxu0 %v359
  %v1948 = vpop.f32.mrb[0].mxu0
  %v1949 = vadd.f32 %v945, %v1948
  %v1950 = vpop.f32.mrb[0].mxu0
  %v1951 = vpop.f32.mrb[0].mxu0
  %v1952 = vadd.f32 %v946, %v1951
  %v1953 = vpop.f32.mrb[0].mxu0
  %1954 = vmatprep.mubr.bf16.mxu0 0
  %1955 = vmatmul.mubr.bf16.gmra.mrb[0].mxu0 %v360
  %v1956 = vpop.f32.mrb[0].mxu0
  %v1957 = vadd.f32 %v947, %v1956
  %v1958 = vpop.f32.mrb[0].mxu0
  %v1959 = vpop.f32.mrb[0].mxu0
  %v1960 = vadd.f32 %v948, %v1959
  %v1961 = vpop.f32.mrb[0].mxu0
  %1962 = vmatprep.mubr.bf16.mxu0 0
  %1963 = vmatmul.mubr.bf16.gmra.mrb[0].mxu0 %v361
  %v1964 = vpop.f32.mrb[0].mxu0
  %v1965 = vadd.f32 %v949, %v1964
  %v1966 = vpop.f32.mrb[0].mxu0
  %v1967 = vpop.f32.mrb[0].mxu0
  %v1968 = vadd.f32 %v950, %v1967
  %v1969 = vpop.f32.mrb[0].mxu0
  %1970 = vmatprep.mubr.bf16.mxu0 0
  %1971 = vmatmul.mubr.bf16.gmra.mrb[0].mxu0 %v362
  %v1972 = vpop.f32.mrb[0].mxu0
  %v1973 = vadd.f32 %v951, %v1972
  %v1974 = vpop.f32.mrb[0].mxu0
  %v1975 = vpop.f32.mrb[0].mxu0
  %v1976 = vadd.f32 %v952, %v1975
  %v1977 = vpop.f32.mrb[0].mxu0
  %1978 = vmatprep.mubr.bf16.mxu0 0
  %1979 = vmatmul.mubr.bf16.gmra.mrb[0].mxu0 %v363
  %v1980 = vpop.f32.mrb[0].mxu0
  %v1981 = vadd.f32 %v953, %v1980
  %v1982 = vpop.f32.mrb[0].mxu0
  %v1983 = vpop.f32.mrb[0].mxu0
  %v1984 = vadd.f32 %v954, %v1983
  %v1985 = vpop.f32.mrb[0].mxu0
  %1986 = vmatprep.mubr.bf16.mxu0 0
  %1987 = vmatmul.mubr.bf16.gmra.mrb[0].mxu0 %v364
  %v1988 = vpop.f32.mrb[0].mxu0
  %v1989 = vadd.f32 %v955, %v1988
  %v1990 = vpop.f32.mrb[0].mxu0
  %v1991 = vpop.f32.mrb[0].mxu0
  %v1992 = vadd.f32 %v956, %v1991
  %v1993 = vpop.f32.mrb[0].mxu0
  %1994 = vmatprep.mubr.bf16.mxu0 0
  %1995 = vmatmul.mubr.bf16.gmra.mrb[0].mxu0 %v365
  %v1996 = vpop.f32.mrb[0].mxu0
  %v1997 = vadd.f32 %v957, %v1996
  %v1998 = vpop.f32.mrb[0].mxu0
  %v1999 = vpop.f32.mrb[0].mxu0
  %v2000 = vadd.f32 %v958, %v1999
  %v2001 = vpop.f32.mrb[0].mxu0
  %2002 = vmatprep.mubr.bf16.mxu0 0
  %2003 = vmatmul.mubr.bf16.gmra.mrb[0].mxu0 %v366
  %v2004 = vpop.f32.mrb[0].mxu0
  %v2005 = vadd.f32 %v959, %v2004
  %v2006 = vpop.f32.mrb[0].mxu0
  %v2007 = vpop.f32.mrb[0].mxu0
  %v2008 = vadd.f32 %v960, %v2007
  %v2009 = vpop.f32.mrb[0].mxu0
  %2010 = vdwg.mxu0
  %v2011 = vlaneseq
  %v2012 = vand.u32 %v2011, 127
  %vm2013 = vcmp.lt.s32.totalorder %v2012, 4
  %v2014 = vsel %vm2013, %v1949, -1e+30
  %v2015 = vsel %vm2013, %v1952, -1e+30
  %v2016 = vsel %vm2013, %v1957, -1e+30
  %v2017 = vsel %vm2013, %v1960, -1e+30
  %v2018 = vsel %vm2013, %v1965, -1e+30
  %v2019 = vsel %vm2013, %v1968, -1e+30
  %v2020 = vsel %vm2013, %v1973, -1e+30
  %v2021 = vsel %vm2013, %v1976, -1e+30
  %v2022 = vsel %vm2013, %v1981, -1e+30
  %v2023 = vsel %vm2013, %v1984, -1e+30
  %v2024 = vsel %vm2013, %v1989, -1e+30
  %v2025 = vsel %vm2013, %v1992, -1e+30
  %v2026 = vsel %vm2013, %v1997, -1e+30
  %v2027 = vsel %vm2013, %v2000, -1e+30
  %v2028 = vsel %vm2013, %v2005, -1e+30
  %v2029 = vsel %vm2013, %v2008, -1e+30
  %2030 = vmax.xlane.f32.xlu0 %v2014
  %v2031 = vpop.xlane.xlu0 %2030
  %2032 = vmax.xlane.f32.xlu0 %v2015
  %v2033 = vpop.xlane.xlu0 %2032
  %2034 = vmax.xlane.f32.xlu0 %v2016
  %v2035 = vpop.xlane.xlu0 %2034
  %2036 = vmax.xlane.f32.xlu0 %v2017
  %v2037 = vpop.xlane.xlu0 %2036
  %2038 = vmax.xlane.f32.xlu0 %v2018
  %v2039 = vpop.xlane.xlu0 %2038
  %2040 = vmax.xlane.f32.xlu0 %v2019
  %v2041 = vpop.xlane.xlu0 %2040
  %2042 = vmax.xlane.f32.xlu0 %v2020
  %v2043 = vpop.xlane.xlu0 %2042
  %2044 = vmax.xlane.f32.xlu0 %v2021
  %v2045 = vpop.xlane.xlu0 %2044
  %2046 = vmax.xlane.f32.xlu0 %v2022
  %v2047 = vpop.xlane.xlu0 %2046
  %2048 = vmax.xlane.f32.xlu0 %v2023
  %v2049 = vpop.xlane.xlu0 %2048
  %2050 = vmax.xlane.f32.xlu0 %v2024
  %v2051 = vpop.xlane.xlu0 %2050
  %2052 = vmax.xlane.f32.xlu0 %v2025
  %v2053 = vpop.xlane.xlu0 %2052
  %2054 = vmax.xlane.f32.xlu0 %v2026
  %v2055 = vpop.xlane.xlu0 %2054
  %2056 = vmax.xlane.f32.xlu0 %v2027
  %v2057 = vpop.xlane.xlu0 %2056
  %2058 = vmax.xlane.f32.xlu0 %v2028
  %v2059 = vpop.xlane.xlu0 %2058
  %2060 = vmax.xlane.f32.xlu0 %v2029
  %v2061 = vpop.xlane.xlu0 %2060
  %v2062 = vsub.f32 %v2014, %v2031
  %v2063 = vsub.f32 %v2015, %v2033
  %v2064 = vsub.f32 %v2016, %v2035
  %v2065 = vsub.f32 %v2017, %v2037
  %v2066 = vsub.f32 %v2018, %v2039
  %v2067 = vsub.f32 %v2019, %v2041
  %v2068 = vsub.f32 %v2020, %v2043
  %v2069 = vsub.f32 %v2021, %v2045
  %v2070 = vsub.f32 %v2022, %v2047
  %v2071 = vsub.f32 %v2023, %v2049
  %v2072 = vsub.f32 %v2024, %v2051
  %v2073 = vsub.f32 %v2025, %v2053
  %v2074 = vsub.f32 %v2026, %v2055
  %v2075 = vsub.f32 %v2027, %v2057
  %v2076 = vsub.f32 %v2028, %v2059
  %v2077 = vsub.f32 %v2029, %v2061
  %v2078 = vmul.f32 %v2062, 1.442695
  %v2079 = vpow.pop %v2078
  %v2080 = vmul.f32 %v2063, 1.442695
  %v2081 = vpow.pop %v2080
  %v2082 = vmul.f32 %v2064, 1.442695
  %v2083 = vpow.pop %v2082
  %v2084 = vmul.f32 %v2065, 1.442695
  %v2085 = vpow.pop %v2084
  %v2086 = vmul.f32 %v2066, 1.442695
  %v2087 = vpow.pop %v2086
  %v2088 = vmul.f32 %v2067, 1.442695
  %v2089 = vpow.pop %v2088
  %v2090 = vmul.f32 %v2068, 1.442695
  %v2091 = vpow.pop %v2090
  %v2092 = vmul.f32 %v2069, 1.442695
  %v2093 = vpow.pop %v2092
  %v2094 = vmul.f32 %v2070, 1.442695
  %v2095 = vpow.pop %v2094
  %v2096 = vmul.f32 %v2071, 1.442695
  %v2097 = vpow.pop %v2096
  %v2098 = vmul.f32 %v2072, 1.442695
  %v2099 = vpow.pop %v2098
  %v2100 = vmul.f32 %v2073, 1.442695
  %v2101 = vpow.pop %v2100
  %v2102 = vmul.f32 %v2074, 1.442695
  %v2103 = vpow.pop %v2102
  %v2104 = vmul.f32 %v2075, 1.442695
  %v2105 = vpow.pop %v2104
  %v2106 = vmul.f32 %v2076, 1.442695
  %v2107 = vpow.pop %v2106
  %v2108 = vmul.f32 %v2077, 1.442695
  %v2109 = vpow.pop %v2108
  %2110 = vadd.xlane.f32.xlu0 %v2079
  %v2111 = vpop.xlane.xlu0 %2110
  %2112 = vadd.xlane.f32.xlu0 %v2081
  %v2113 = vpop.xlane.xlu0 %2112
  %2114 = vadd.xlane.f32.xlu0 %v2083
  %v2115 = vpop.xlane.xlu0 %2114
  %2116 = vadd.xlane.f32.xlu0 %v2085
  %v2117 = vpop.xlane.xlu0 %2116
  %2118 = vadd.xlane.f32.xlu0 %v2087
  %v2119 = vpop.xlane.xlu0 %2118
  %2120 = vadd.xlane.f32.xlu0 %v2089
  %v2121 = vpop.xlane.xlu0 %2120
  %2122 = vadd.xlane.f32.xlu0 %v2091
  %v2123 = vpop.xlane.xlu0 %2122
  %2124 = vadd.xlane.f32.xlu0 %v2093
  %v2125 = vpop.xlane.xlu0 %2124
  %2126 = vadd.xlane.f32.xlu0 %v2095
  %v2127 = vpop.xlane.xlu0 %2126
  %2128 = vadd.xlane.f32.xlu0 %v2097
  %v2129 = vpop.xlane.xlu0 %2128
  %2130 = vadd.xlane.f32.xlu0 %v2099
  %v2131 = vpop.xlane.xlu0 %2130
  %2132 = vadd.xlane.f32.xlu0 %v2101
  %v2133 = vpop.xlane.xlu0 %2132
  %2134 = vadd.xlane.f32.xlu0 %v2103
  %v2135 = vpop.xlane.xlu0 %2134
  %2136 = vadd.xlane.f32.xlu0 %v2105
  %v2137 = vpop.xlane.xlu0 %2136
  %2138 = vadd.xlane.f32.xlu0 %v2107
  %v2139 = vpop.xlane.xlu0 %2138
  %2140 = vadd.xlane.f32.xlu0 %v2109
  %v2141 = vpop.xlane.xlu0 %2140
  %v2142 = vlog2.pop %v2111
  %v2143 = vmul.f32 %v2142, 0.6931472
  %v2144 = vlog2.pop %v2113
  %v2145 = vmul.f32 %v2144, 0.6931472
  %v2146 = vlog2.pop %v2115
  %v2147 = vmul.f32 %v2146, 0.6931472
  %v2148 = vlog2.pop %v2117
  %v2149 = vmul.f32 %v2148, 0.6931472
  %v2150 = vlog2.pop %v2119
  %v2151 = vmul.f32 %v2150, 0.6931472
  %v2152 = vlog2.pop %v2121
  %v2153 = vmul.f32 %v2152, 0.6931472
  %v2154 = vlog2.pop %v2123
  %v2155 = vmul.f32 %v2154, 0.6931472
  %v2156 = vlog2.pop %v2125
  %v2157 = vmul.f32 %v2156, 0.6931472
  %v2158 = vlog2.pop %v2127
  %v2159 = vmul.f32 %v2158, 0.6931472
  %v2160 = vlog2.pop %v2129
  %v2161 = vmul.f32 %v2160, 0.6931472
  %v2162 = vlog2.pop %v2131
  %v2163 = vmul.f32 %v2162, 0.6931472
  %v2164 = vlog2.pop %v2133
  %v2165 = vmul.f32 %v2164, 0.6931472
  %v2166 = vlog2.pop %v2135
  %v2167 = vmul.f32 %v2166, 0.6931472
  %v2168 = vlog2.pop %v2137
  %v2169 = vmul.f32 %v2168, 0.6931472
  %v2170 = vlog2.pop %v2139
  %v2171 = vmul.f32 %v2170, 0.6931472
  %v2172 = vlog2.pop %v2141
  %v2173 = vmul.f32 %v2172, 0.6931472
  %v2174 = vsub.f32 %v2062, %v2143
  %v2175 = vsub.f32 %v2063, %v2145
  %v2176 = vsub.f32 %v2064, %v2147
  %v2177 = vsub.f32 %v2065, %v2149
  %v2178 = vsub.f32 %v2066, %v2151
  %v2179 = vsub.f32 %v2067, %v2153
  %v2180 = vsub.f32 %v2068, %v2155
  %v2181 = vsub.f32 %v2069, %v2157
  %v2182 = vsub.f32 %v2070, %v2159
  %v2183 = vsub.f32 %v2071, %v2161
  %v2184 = vsub.f32 %v2072, %v2163
  %v2185 = vsub.f32 %v2073, %v2165
  %v2186 = vsub.f32 %v2074, %v2167
  %v2187 = vsub.f32 %v2075, %v2169
  %v2188 = vsub.f32 %v2076, %v2171
  %v2189 = vsub.f32 %v2077, %v2173
  %2190 = vst [vmem:[%s6] sm:$0xff] %v2174
  %2191 = vst [vmem:[%s6 + $0x8] sm:$0xff] %v2175
  %2192 = vst [vmem:[%s6 + $0x10] sm:$0xff] %v2176
  %2193 = vst [vmem:[%s6 + $0x18] sm:$0xff] %v2177
  %2194 = vst [vmem:[%s6 + $0x20] sm:$0xff] %v2178
  %2195 = vst [vmem:[%s6 + $0x28] sm:$0xff] %v2179
  %2196 = vst [vmem:[%s6 + $0x30] sm:$0xff] %v2180
  %2197 = vst [vmem:[%s6 + $0x38] sm:$0xff] %v2181
  %2198 = vst [vmem:[%s6 + $0x40] sm:$0xff] %v2182
  %2199 = vst [vmem:[%s6 + $0x48] sm:$0xff] %v2183
  %2200 = vst [vmem:[%s6 + $0x50] sm:$0xff] %v2184
  %2201 = vst [vmem:[%s6 + $0x58] sm:$0xff] %v2185
  %2202 = vst [vmem:[%s6 + $0x60] sm:$0xff] %v2186
  %2203 = vst [vmem:[%s6 + $0x68] sm:$0xff] %v2187
  %2204 = vst [vmem:[%s6 + $0x70] sm:$0xff] %v2188
  %2205 = vst [vmem:[%s6 + $0x78] sm:$0xff] %v2189
  // Predicated region
  $region26: #{appnp_forward.1} parent=0 // pred_check
    _
  $region27: #{appnp_forward.1} parent=0 // pred_check_branch
    %2207 = sbr.rel (0) target = $region29
  $region28: #{appnp_forward.1} parent=0 // pred_region
    _
  $region29: #{appnp_forward.1} parent=0 // pred_fallthru
    _
  // Predicated region
  $region30: #{appnp_forward.1} parent=0 // pred_check
    _
  $region31: #{appnp_forward.1} parent=0 // pred_check_branch
    %2209 = sbr.rel (0) target = $region33
  $region32: #{appnp_forward.1} parent=0 // pred_region
    _
  $region33: #{appnp_forward.1} parent=0 // pred_fallthru
    _

</llo_original>
